<compile_context>
chip_gen: v5e
topology: v5e:2x2
jax: 0.10.0
libtpu: 0.0.40
codegen_flags: <defaults>
</compile_context>

<pallas_src>
import numpy as np
import jax
import jax.numpy as jnp
from jax import lax
from jax.experimental import pallas as pl
from jax.experimental.pallas import tpu as pltpu

EPS = 1e-8  # matches nn.GroupNorm(..., eps=1e-08) in the reference module


# ----------------------- host-side structural constants ----------------------
def _structural_constants(B, L, H, dilations):
    BL = B * L
    lane = np.arange(BL)
    seg = lane // L            # sample index per lane
    pos = lane % L             # time index per lane
    # per-sample lane-segment sum matrix (symmetric 0/1 blocks)
    pmask = (seg[:, None] == seg[None, :]).astype(np.float32)          # (BL, BL)
    # sum over the 4 samples and replicate into every segment
    rsum = (pos[:, None] == pos[None, :]).astype(np.float32)           # (BL, BL)
    # hidden-axis +/-1 shift stack [Dn; Up]: (Dn@y)[h]=y[h-1], (Up@y)[h]=y[h+1]
    h = np.arange(H)
    dn = (h[None, :] == h[:, None] - 1).astype(np.float32)
    up = (h[None, :] == h[:, None] + 1).astype(np.float32)
    du = np.concatenate([dn, up], axis=0)                              # (2H, H)
    # block-diagonal time-shift matrices, one pair per DISTINCT dilation,
    # concatenated [left | right] so the kernel needs a single matmul per block
    uniq = sorted(set(int(d) for d in dilations))
    same = (seg[:, None] == seg[None, :])
    shlr = []
    for d in uniq:
        left = (same & (lane[:, None] == lane[None, :] - d)).astype(np.float32)
        right = (same & (lane[:, None] == lane[None, :] + d)).astype(np.float32)
        shlr.append(np.concatenate([left, right], axis=1))             # (BL, 2BL)
    dil_map = {d: i for i, d in enumerate(uniq)}
    return (jnp.asarray(pmask), jnp.asarray(rsum), jnp.asarray(du),
            jnp.asarray(np.stack(shlr)), dil_map)


# ----------------------------- Pallas forward --------------------------------
def tcn_d_forward(x, params):
    """x: (B=4, input_dim, L) float32. Returns (B, output_dim, L)."""
    B, Cin, L = x.shape
    assert B == 4, "TCN_D's Conv2d 4ch trick requires batch == 4"
    BL = B * L
    blocks = params['blocks']
    nb = len(blocks)
    dilations = tuple(int(b['dil']) for b in blocks)
    H = blocks[0]['w1'].shape[0]
    BN = params['bn_w'].shape[0]
    Cout = params['out_w'].shape[0]

    # lane-dense input: (Cin, B*L), lane index = b*L + l
    x_ld = jnp.transpose(x, (1, 0, 2)).reshape(Cin, BL)

    # --- stacked per-block parameters (one ref per tensor) --------------------
    st = lambda k: jnp.stack([b[k] for b in blocks])
    W1, B1, G1, BE1 = st('w1'), st('b1'), st('g1'), st('be1')
    WD, BD, G2, BE2 = st('wd'), st('bd'), st('g2'), st('be2')
    # fused residual+skip weights / biases: (nb, 2*BN, H) / (nb, 2*BN, 1)
    WRS = jnp.stack([jnp.concatenate([b['wr'], b['ws']], axis=0) for b in blocks])
    BRS = jnp.stack([jnp.concatenate([b['br'], b['bs']], axis=0) for b in blocks])

    # --- precomputed lane-weight vectors (replace in-kernel lane_const) -------
    def lane_rep(v):                       # (B,) -> (BL,) with lane = b*L + l
        return jnp.repeat(v.reshape(B), L)
    WT = jnp.stack([jnp.stack([lane_rep(b['w2'][:, k]) for k in range(3)])
                    for b in blocks])                                  # (nb, 3, BL)
    WIl = jnp.stack([lane_rep(b['wi'][:, 0]).reshape(1, BL) for b in blocks])
    BIl = jnp.stack([lane_rep(b['bi'][:, 0]).reshape(1, BL) for b in blocks])

    # --- single flat SMEM scalar array: per block (a1, a2, b2), then out_alpha
    sc = []
    for b in blocks:
        sc += [b['alpha1'].reshape(()), b['alpha2'].reshape(()), b['b2'].reshape(())]
    sc.append(params['out_alpha'].reshape(()))
    SCAL = jnp.stack(sc).astype(jnp.float32)                           # (3*nb + 1,)

    # --- structural constants (host-built, memoized per dilation) -------------
    Pmask, Rsum, DU, ShLR, dil_map = _structural_constants(B, L, H, dilations)
    dil_idx = tuple(dil_map[d] for d in dilations)

    def kernel(x_ref, lng_ref, lnb_ref, bnw_ref, bnb_ref,
               w1_ref, b1_ref, g1_ref, be1_ref,
               wd_ref, bd_ref, g2_ref, be2_ref,
               wrs_ref, brs_ref, ow_ref, ob_ref,
               wt_ref, wil_ref, bil_ref,
               pmask_ref, rsum_ref, du_ref, shlr_ref,
               scal_ref,
               o_ref):
        f32 = jnp.float32
        pmask = pmask_ref[...]
        rsum = rsum_ref[...]
        du = du_ref[...]

        def prelu(y, a):                   # a: SMEM scalar
            return jnp.where(y >= 0, y, a * y)

        def gn_ld(y, gamma, beta):
            # per-lane-segment GroupNorm(1); one stacked stats matmul on the MXU
            C = y.shape[0]
            inv_n = 1.0 / (C * L)
            stk = jnp.concatenate([y, y * y], axis=0)                  # (2C, BL)
            sums = jnp.dot(stk, pmask, preferred_element_type=f32)     # (2C, BL)
            s1 = jnp.sum(sums[:C], axis=0, keepdims=True)              # (1, BL)
            s2 = jnp.sum(sums[C:], axis=0, keepdims=True)
            mean = s1 * inv_n
            var = jnp.maximum(s2 * inv_n - mean * mean, 0.0)
            return (y - mean) * lax.rsqrt(var + EPS) * gamma + beta

        # ---- LN + bottleneck -------------------------------------------------
        h = gn_ld(x_ref[...], lng_ref[...], lnb_ref[...])
        out = jnp.dot(bnw_ref[...], h, preferred_element_type=f32) + bnb_ref[...]
        skip = jnp.zeros_like(out)                                     # (BN, BL)

        # ---- DepthConv1d_D blocks (statically unrolled) ------------------------
        for blk in range(nb):
            di = dil_idx[blk]
            a1 = scal_ref[3 * blk + 0]
            a2 = scal_ref[3 * blk + 1]
            b2 = scal_ref[3 * blk + 2]

            # (1) 1x1 conv -> PReLU -> GN (batched, full-lane MXU matmul)
            h1 = jnp.dot(w1_ref[blk], out, preferred_element_type=f32) + b1_ref[blk]
            h1 = gn_ld(prelu(h1, a1), g1_ref[blk], be1_ref[blk])       # (H, BL)

            # (2) Conv2d 4->1, kernel (3,1), pad (1,0): one fused hidden-shift
            #     matmul + per-lane tap weights + segment sum-and-replicate.
            sh = jnp.dot(du, h1, preferred_element_type=f32)           # (2H, BL)
            wt = wt_ref[blk]                                           # (3, BL)
            weighted = wt[0:1] * sh[:H] + wt[1:2] * h1 + wt[2:3] * sh[H:]
            h2 = jnp.dot(weighted, rsum, preferred_element_type=f32) + b2
            h2 = gn_ld(prelu(h2, a1), g1_ref[blk], be1_ref[blk])       # (H, BL), replicated

            # (3) depthwise dilated conv (kernel 3, pad=dil): one fused
            #     block-diagonal [left|right] time-shift matmul.
            wd = wd_ref[blk]                                           # (H, 3)
            lr = jnp.dot(h2, shlr_ref[di], preferred_element_type=f32) # (H, 2*BL)
            h3 = (wd[:, 0:1] * lr[:, :BL] + wd[:, 1:2] * h2
                  + wd[:, 2:3] * lr[:, BL:] + bd_ref[blk])
            h3 = gn_ld(prelu(h3, a2), g2_ref[blk], be2_ref[blk])       # (H, BL), replicated

            # (4) inversion Conv2d 1->4: per-lane scale/bias -> PReLU -> GN
            h4 = gn_ld(prelu(wil_ref[blk] * h3 + bil_ref[blk], a1),
                       g1_ref[blk], be1_ref[blk])                      # (H, BL)

            # (5) fused residual + skip 1x1 convs (one matmul, sliced)
            rs = jnp.dot(wrs_ref[blk], h4, preferred_element_type=f32) + brs_ref[blk]
            out = out + rs[:BN]
            skip = skip + rs[BN:]

        # ---- output layer: PReLU -> 1x1 conv ---------------------------------
        oa = scal_ref[3 * nb]
        y = jnp.dot(ow_ref[...], prelu(skip, oa),
                    preferred_element_type=f32) + ob_ref[...]
        o_ref[...] = y.astype(o_ref.dtype)                             # (Cout, 128)

    vmem = pl.BlockSpec(memory_space=pltpu.MemorySpace.VMEM)
    smem = pl.BlockSpec(memory_space=pltpu.MemorySpace.SMEM)

    y_ld = pl.pallas_call(
        kernel,
        out_shape=jax.ShapeDtypeStruct((Cout, BL), x.dtype),
        in_specs=[vmem] * 24 + [smem],
        out_specs=vmem,
    )(x_ld, params['ln_g'], params['ln_b'], params['bn_w'], params['bn_b'],
      W1, B1, G1, BE1, WD, BD, G2, BE2, WRS, BRS,
      params['out_w'], params['out_b'],
      WT, WIl, BIl, Pmask, Rsum, DU, ShLR,
      SCAL)

    # back to PyTorch's (B, C, L) layout
    return jnp.transpose(y_ld.reshape(Cout, B, L), (1, 0, 2))


# --------------------- pure-JAX reference (for validation) -------------------
def _ref_forward(x, params):
    def gn(v, g, b):  # v: (N, C, L), per-sample GroupNorm(1)
        m = jnp.mean(v, axis=(1, 2), keepdims=True)
        var = jnp.mean((v - m) ** 2, axis=(1, 2), keepdims=True)
        return (v - m) * lax.rsqrt(var + EPS) * g[None] + b[None]

    def prelu(v, a):
        return jnp.where(v >= 0, v, a * v)

    def conv1x1(v, w, b):  # v: (N, Cin, L)
        return jnp.einsum('oc,ncl->nol', w, v) + b[None]

    h = gn(x, params['ln_g'], params['ln_b'])
    out = conv1x1(h, params['bn_w'], params['bn_b'])
    skip = jnp.zeros_like(out)
    for blk in params['blocks']:
        dil = int(blk['dil'])
        a1 = blk['alpha1'][0, 0]
        a2 = blk['alpha2'][0, 0]
        H = blk['w1'].shape[0]
        L = x.shape[2]
        h1 = gn(prelu(conv1x1(out, blk['w1'], blk['b1']), a1),
                blk['g1'], blk['be1'])                                # (4, H, L)
        # Conv2d 4->1, kernel (3,1), pad (1,0) along the hidden axis
        hp = jnp.pad(h1, ((0, 0), (1, 1), (0, 0)))
        h2 = sum(blk['w2'][c, k] * hp[c, k:k + H, :]
                 for c in range(4) for k in range(3)) + blk['b2'][0, 0]
        h2 = gn(prelu(h2, a1)[None], blk['g1'], blk['be1'])[0]        # (H, L)
        # depthwise dilated conv
        hp2 = jnp.pad(h2, ((0, 0), (dil, dil)))
        h3 = (blk['wd'][:, 0:1] * hp2[:, 0:L]
              + blk['wd'][:, 1:2] * hp2[:, dil:dil + L]
              + blk['wd'][:, 2:3] * hp2[:, 2 * dil:2 * dil + L]) + blk['bd']
        h3 = gn(prelu(h3, a2)[None], blk['g2'], blk['be2'])[0]        # (H, L)
        # inversion Conv2d 1->4
        h4 = blk['wi'][:, :, None] * h3[None] + blk['bi'][:, :, None]
        h4 = gn(prelu(h4, a1), blk['g1'], blk['be1'])                 # (4, H, L)
        out = out + conv1x1(h4, blk['wr'], blk['br'])
        skip = skip + conv1x1(h4, blk['ws'], blk['bs'])
    return conv1x1(prelu(skip, params['out_alpha'][0, 0]),
                   params['out_w'], params['out_b'])


# ---------------------- parameter construction + run -------------------------
if __name__ == "__main__":
    B, input_dim, L = 4, 8, 32          # batch MUST be 4 (conv2d 4ch trick)
    BN_dim, hidden_dim, output_dim = 8, 16, 8
    layer, stack = 2, 1                 # kernel=3, skip=True, causal=False, dilated=True

    key = jax.random.PRNGKey(0)
    keys = iter(jax.random.split(key, 256))

    def nrm(shape, scale=0.1):
        return (scale * jax.random.normal(next(keys), shape)).astype(jnp.float32)

    params = {
        'ln_g': jnp.ones((input_dim, 1), jnp.float32),
        'ln_b': jnp.zeros((input_dim, 1), jnp.float32),
        'bn_w': nrm((BN_dim, input_dim)),
        'bn_b': nrm((BN_dim, 1), 0.01),
        'out_alpha': jnp.full((1, 1), 0.25, jnp.float32),
        'out_w': nrm((output_dim, BN_dim)),
        'out_b': nrm((output_dim, 1), 0.01),
        'blocks': [],
    }
    for s in range(stack):
        for i in range(layer):
            params['blocks'].append(dict(
                dil=2 ** i,
                w1=nrm((hidden_dim, BN_dim)), b1=nrm((hidden_dim, 1), 0.01),
                w2=nrm((4, 3)), b2=nrm((1, 1), 0.01),
                wi=nrm((4, 1)), bi=nrm((4, 1), 0.01),
                wd=nrm((hidden_dim, 3)), bd=nrm((hidden_dim, 1), 0.01),
                wr=nrm((BN_dim, hidden_dim)), br=nrm((BN_dim, 1), 0.01),
                ws=nrm((BN_dim, hidden_dim)), bs=nrm((BN_dim, 1), 0.01),
                alpha1=jnp.full((1, 1), 0.25, jnp.float32),
                alpha2=jnp.full((1, 1), 0.25, jnp.float32),
                g1=jnp.ones((hidden_dim, 1), jnp.float32),
                be1=jnp.zeros((hidden_dim, 1), jnp.float32),
                g2=jnp.ones((hidden_dim, 1), jnp.float32),
                be2=jnp.zeros((hidden_dim, 1), jnp.float32),
            ))

    x = jax.random.normal(next(keys), (B, input_dim, L), jnp.float32)

    y = tcn_d_forward(x, params)
    jax.block_until_ready(y)
    assert y.shape == (B, output_dim, L), y.shape

    y_ref = _ref_forward(x, params)
    err = float(jnp.max(jnp.abs(y - y_ref)))
    assert err < 1e-3, f"kernel/reference mismatch: max abs diff = {err}"
    print("KERNEL_OK")
</pallas_src>

<mosaic_0001>
module attributes {stable_mosaic.version = 11 : i64} {
  func.func @kernel(%arg0: memref<8x128xf32, #tpu.memory_space<vmem>>, %arg1: memref<8x1xf32, #tpu.memory_space<vmem>>, %arg2: memref<8x1xf32, #tpu.memory_space<vmem>>, %arg3: memref<8x8xf32, #tpu.memory_space<vmem>>, %arg4: memref<8x1xf32, #tpu.memory_space<vmem>>, %arg5: memref<2x16x8xf32, #tpu.memory_space<vmem>>, %arg6: memref<2x16x1xf32, #tpu.memory_space<vmem>>, %arg7: memref<2x16x1xf32, #tpu.memory_space<vmem>>, %arg8: memref<2x16x1xf32, #tpu.memory_space<vmem>>, %arg9: memref<2x16x3xf32, #tpu.memory_space<vmem>>, %arg10: memref<2x16x1xf32, #tpu.memory_space<vmem>>, %arg11: memref<2x16x1xf32, #tpu.memory_space<vmem>>, %arg12: memref<2x16x1xf32, #tpu.memory_space<vmem>>, %arg13: memref<2x16x16xf32, #tpu.memory_space<vmem>>, %arg14: memref<2x16x1xf32, #tpu.memory_space<vmem>>, %arg15: memref<8x8xf32, #tpu.memory_space<vmem>>, %arg16: memref<8x1xf32, #tpu.memory_space<vmem>>, %arg17: memref<2x3x128xf32, #tpu.memory_space<vmem>>, %arg18: memref<2x1x128xf32, #tpu.memory_space<vmem>>, %arg19: memref<2x1x128xf32, #tpu.memory_space<vmem>>, %arg20: memref<128x128xf32, #tpu.memory_space<vmem>>, %arg21: memref<128x128xf32, #tpu.memory_space<vmem>>, %arg22: memref<32x16xf32, #tpu.memory_space<vmem>>, %arg23: memref<2x128x256xf32, #tpu.memory_space<vmem>>, %arg24: memref<7xf32, #tpu.memory_space<smem>>, %arg25: memref<8x128xf32, #tpu.memory_space<vmem>>) attributes {dimension_semantics = [], scalar_prefetch = 0 : i64, scratch_operands = 0 : i64, tpu.core_type = #tpu.core_type<tc>} {
    %c0 = arith.constant 0 : index
    %c0_0 = arith.constant 0 : index
    %0 = vector.load %arg20[%c0, %c0_0] : memref<128x128xf32, #tpu.memory_space<vmem>>, vector<128x128xf32>
    %c0_1 = arith.constant 0 : index
    %c0_2 = arith.constant 0 : index
    %1 = vector.load %arg21[%c0_1, %c0_2] : memref<128x128xf32, #tpu.memory_space<vmem>>, vector<128x128xf32>
    %c0_3 = arith.constant 0 : index
    %c0_4 = arith.constant 0 : index
    %2 = vector.load %arg22[%c0_3, %c0_4] : memref<32x16xf32, #tpu.memory_space<vmem>>, vector<32x16xf32>
    %c0_5 = arith.constant 0 : index
    %c0_6 = arith.constant 0 : index
    %3 = vector.load %arg0[%c0_5, %c0_6] : memref<8x128xf32, #tpu.memory_space<vmem>>, vector<8x128xf32>
    %c0_7 = arith.constant 0 : index
    %c0_8 = arith.constant 0 : index
    %4 = vector.load %arg1[%c0_7, %c0_8] : memref<8x1xf32, #tpu.memory_space<vmem>>, vector<8x1xf32>
    %c0_9 = arith.constant 0 : index
    %c0_10 = arith.constant 0 : index
    %5 = vector.load %arg2[%c0_9, %c0_10] : memref<8x1xf32, #tpu.memory_space<vmem>>, vector<8x1xf32>
    %6 = arith.mulf %3, %3 : vector<8x128xf32>
    %7 = tpu.concatenate %3, %6 in 0 : vector<8x128xf32>, vector<8x128xf32> -> vector<16x128xf32>
    %cst = arith.constant dense<0.000000e+00> : vector<16x128xf32>
    %8 = tpu.matmul %7, %0, %cst {dimension_numbers = #tpu.dot_dimension_numbers<[1], [0], [0], [1], [0, 0, 1, 1], [], []>} : vector<16x128xf32>, vector<128x128xf32>, vector<16x128xf32> -> vector<16x128xf32>
    %9 = vector.extract_strided_slice %8 {offsets = [0, 0], sizes = [8, 128], strides = [1, 1]} : vector<16x128xf32> to vector<8x128xf32>
    %cst_11 = arith.constant dense<0.000000e+00> : vector<128xf32>
    %10 = vector.multi_reduction <add>, %9, %cst_11 [0] : vector<8x128xf32> to vector<128xf32>
    %11 = vector.shape_cast %10 : vector<128xf32> to vector<1x128xf32>
    %12 = vector.extract_strided_slice %8 {offsets = [8, 0], sizes = [8, 128], strides = [1, 1]} : vector<16x128xf32> to vector<8x128xf32>
    %cst_12 = arith.constant dense<0.000000e+00> : vector<128xf32>
    %13 = vector.multi_reduction <add>, %12, %cst_12 [0] : vector<8x128xf32> to vector<128xf32>
    %14 = vector.shape_cast %13 : vector<128xf32> to vector<1x128xf32>
    %cst_13 = arith.constant 3.906250e-03 : f32
    %15 = vector.broadcast %cst_13 : f32 to vector<1x128xf32>
    %16 = arith.mulf %11, %15 : vector<1x128xf32>
    %cst_14 = arith.constant 3.906250e-03 : f32
    %17 = vector.broadcast %cst_14 : f32 to vector<1x128xf32>
    %18 = arith.mulf %14, %17 : vector<1x128xf32>
    %19 = arith.mulf %16, %16 : vector<1x128xf32>
    %20 = arith.subf %18, %19 : vector<1x128xf32>
    %cst_15 = arith.constant 0.000000e+00 : f32
    %21 = vector.broadcast %cst_15 : f32 to vector<1x128xf32>
    %22 = arith.maximumf %20, %21 : vector<1x128xf32>
    %23 = vector.broadcast %16 : vector<1x128xf32> to vector<8x128xf32>
    %24 = arith.subf %3, %23 : vector<8x128xf32>
    %cst_16 = arith.constant 9.99999993E-9 : f32
    %25 = vector.broadcast %cst_16 : f32 to vector<1x128xf32>
    %26 = arith.addf %22, %25 : vector<1x128xf32>
    %27 = math.rsqrt %26 : vector<1x128xf32>
    %28 = vector.broadcast %27 : vector<1x128xf32> to vector<8x128xf32>
    %29 = arith.mulf %24, %28 : vector<8x128xf32>
    %30 = vector.broadcast %4 : vector<8x1xf32> to vector<8x128xf32>
    %31 = arith.mulf %29, %30 : vector<8x128xf32>
    %32 = vector.broadcast %5 : vector<8x1xf32> to vector<8x128xf32>
    %33 = arith.addf %31, %32 : vector<8x128xf32>
    %c0_17 = arith.constant 0 : index
    %c0_18 = arith.constant 0 : index
    %34 = vector.load %arg3[%c0_17, %c0_18] : memref<8x8xf32, #tpu.memory_space<vmem>>, vector<8x8xf32>
    %cst_19 = arith.constant dense<0.000000e+00> : vector<8x128xf32>
    %35 = tpu.matmul %34, %33, %cst_19 {dimension_numbers = #tpu.dot_dimension_numbers<[1], [0], [0], [1], [0, 0, 1, 1], [], []>} : vector<8x8xf32>, vector<8x128xf32>, vector<8x128xf32> -> vector<8x128xf32>
    %c0_20 = arith.constant 0 : index
    %c0_21 = arith.constant 0 : index
    %36 = vector.load %arg4[%c0_20, %c0_21] : memref<8x1xf32, #tpu.memory_space<vmem>>, vector<8x1xf32>
    %37 = vector.broadcast %36 : vector<8x1xf32> to vector<8x128xf32>
    %38 = arith.addf %35, %37 : vector<8x128xf32>
    %cst_22 = arith.constant 0.000000e+00 : f32
    %39 = vector.broadcast %cst_22 : f32 to vector<8x128xf32>
    %c0_23 = arith.constant 0 : index
    %40 = memref.load %arg24[%c0_23] : memref<7xf32, #tpu.memory_space<smem>>
    %c1 = arith.constant 1 : index
    %41 = memref.load %arg24[%c1] : memref<7xf32, #tpu.memory_space<smem>>
    %c2 = arith.constant 2 : index
    %42 = memref.load %arg24[%c2] : memref<7xf32, #tpu.memory_space<smem>>
    %c0_24 = arith.constant 0 : index
    %c0_25 = arith.constant 0 : index
    %c0_26 = arith.constant 0 : index
    %43 = vector.load %arg5[%c0_24, %c0_25, %c0_26] : memref<2x16x8xf32, #tpu.memory_space<vmem>>, vector<1x16x8xf32>
    %44 = vector.shape_cast %43 : vector<1x16x8xf32> to vector<16x8xf32>
    %cst_27 = arith.constant dense<0.000000e+00> : vector<16x128xf32>
    %45 = tpu.matmul %44, %38, %cst_27 {dimension_numbers = #tpu.dot_dimension_numbers<[1], [0], [0], [1], [0, 0, 1, 1], [], []>} : vector<16x8xf32>, vector<8x128xf32>, vector<16x128xf32> -> vector<16x128xf32>
    %c0_28 = arith.constant 0 : index
    %c0_29 = arith.constant 0 : index
    %c0_30 = arith.constant 0 : index
    %46 = vector.load %arg6[%c0_28, %c0_29, %c0_30] : memref<2x16x1xf32, #tpu.memory_space<vmem>>, vector<1x16x1xf32>
    %47 = vector.shape_cast %46 : vector<1x16x1xf32> to vector<16x1xf32>
    %48 = vector.broadcast %47 : vector<16x1xf32> to vector<16x128xf32>
    %49 = arith.addf %45, %48 : vector<16x128xf32>
    %cst_31 = arith.constant 0.000000e+00 : f32
    %50 = vector.broadcast %cst_31 : f32 to vector<16x128xf32>
    %51 = arith.cmpf oge, %49, %50 : vector<16x128xf32>
    %52 = vector.broadcast %40 : f32 to vector<16x128xf32>
    %53 = arith.mulf %52, %49 : vector<16x128xf32>
    %54 = arith.select %51, %49, %53 : vector<16x128xi1>, vector<16x128xf32>
    %c0_32 = arith.constant 0 : index
    %c0_33 = arith.constant 0 : index
    %c0_34 = arith.constant 0 : index
    %55 = vector.load %arg7[%c0_32, %c0_33, %c0_34] : memref<2x16x1xf32, #tpu.memory_space<vmem>>, vector<1x16x1xf32>
    %56 = vector.shape_cast %55 : vector<1x16x1xf32> to vector<16x1xf32>
    %c0_35 = arith.constant 0 : index
    %c0_36 = arith.constant 0 : index
    %c0_37 = arith.constant 0 : index
    %57 = vector.load %arg8[%c0_35, %c0_36, %c0_37] : memref<2x16x1xf32, #tpu.memory_space<vmem>>, vector<1x16x1xf32>
    %58 = vector.shape_cast %57 : vector<1x16x1xf32> to vector<16x1xf32>
    %59 = arith.mulf %54, %54 : vector<16x128xf32>
    %60 = tpu.concatenate %54, %59 in 0 : vector<16x128xf32>, vector<16x128xf32> -> vector<32x128xf32>
    %cst_38 = arith.constant dense<0.000000e+00> : vector<32x128xf32>
    %61 = tpu.matmul %60, %0, %cst_38 {dimension_numbers = #tpu.dot_dimension_numbers<[1], [0], [0], [1], [0, 0, 1, 1], [], []>} : vector<32x128xf32>, vector<128x128xf32>, vector<32x128xf32> -> vector<32x128xf32>
    %62 = vector.extract_strided_slice %61 {offsets = [0, 0], sizes = [16, 128], strides = [1, 1]} : vector<32x128xf32> to vector<16x128xf32>
    %cst_39 = arith.constant dense<0.000000e+00> : vector<128xf32>
    %63 = vector.multi_reduction <add>, %62, %cst_39 [0] : vector<16x128xf32> to vector<128xf32>
    %64 = vector.shape_cast %63 : vector<128xf32> to vector<1x128xf32>
    %65 = vector.extract_strided_slice %61 {offsets = [16, 0], sizes = [16, 128], strides = [1, 1]} : vector<32x128xf32> to vector<16x128xf32>
    %cst_40 = arith.constant dense<0.000000e+00> : vector<128xf32>
    %66 = vector.multi_reduction <add>, %65, %cst_40 [0] : vector<16x128xf32> to vector<128xf32>
    %67 = vector.shape_cast %66 : vector<128xf32> to vector<1x128xf32>
    %cst_41 = arith.constant 0.001953125 : f32
    %68 = vector.broadcast %cst_41 : f32 to vector<1x128xf32>
    %69 = arith.mulf %64, %68 : vector<1x128xf32>
    %cst_42 = arith.constant 0.001953125 : f32
    %70 = vector.broadcast %cst_42 : f32 to vector<1x128xf32>
    %71 = arith.mulf %67, %70 : vector<1x128xf32>
    %72 = arith.mulf %69, %69 : vector<1x128xf32>
    %73 = arith.subf %71, %72 : vector<1x128xf32>
    %cst_43 = arith.constant 0.000000e+00 : f32
    %74 = vector.broadcast %cst_43 : f32 to vector<1x128xf32>
    %75 = arith.maximumf %73, %74 : vector<1x128xf32>
    %76 = vector.broadcast %69 : vector<1x128xf32> to vector<16x128xf32>
    %77 = arith.subf %54, %76 : vector<16x128xf32>
    %cst_44 = arith.constant 9.99999993E-9 : f32
    %78 = vector.broadcast %cst_44 : f32 to vector<1x128xf32>
    %79 = arith.addf %75, %78 : vector<1x128xf32>
    %80 = math.rsqrt %79 : vector<1x128xf32>
    %81 = vector.broadcast %80 : vector<1x128xf32> to vector<16x128xf32>
    %82 = arith.mulf %77, %81 : vector<16x128xf32>
    %83 = vector.broadcast %56 : vector<16x1xf32> to vector<16x128xf32>
    %84 = arith.mulf %82, %83 : vector<16x128xf32>
    %85 = vector.broadcast %58 : vector<16x1xf32> to vector<16x128xf32>
    %86 = arith.addf %84, %85 : vector<16x128xf32>
    %cst_45 = arith.constant dense<0.000000e+00> : vector<32x128xf32>
    %87 = tpu.matmul %2, %86, %cst_45 {dimension_numbers = #tpu.dot_dimension_numbers<[1], [0], [0], [1], [0, 0, 1, 1], [], []>} : vector<32x16xf32>, vector<16x128xf32>, vector<32x128xf32> -> vector<32x128xf32>
    %c0_46 = arith.constant 0 : index
    %c0_47 = arith.constant 0 : index
    %c0_48 = arith.constant 0 : index
    %88 = vector.load %arg17[%c0_46, %c0_47, %c0_48] : memref<2x3x128xf32, #tpu.memory_space<vmem>>, vector<1x3x128xf32>
    %89 = vector.shape_cast %88 : vector<1x3x128xf32> to vector<3x128xf32>
    %90 = vector.extract_strided_slice %89 {offsets = [0, 0], sizes = [1, 128], strides = [1, 1]} : vector<3x128xf32> to vector<1x128xf32>
    %91 = vector.extract_strided_slice %87 {offsets = [0, 0], sizes = [16, 128], strides = [1, 1]} : vector<32x128xf32> to vector<16x128xf32>
    %92 = vector.broadcast %90 : vector<1x128xf32> to vector<16x128xf32>
    %93 = arith.mulf %92, %91 : vector<16x128xf32>
    %94 = vector.extract_strided_slice %89 {offsets = [1, 0], sizes = [1, 128], strides = [1, 1]} : vector<3x128xf32> to vector<1x128xf32>
    %95 = vector.broadcast %94 : vector<1x128xf32> to vector<16x128xf32>
    %96 = arith.mulf %95, %86 : vector<16x128xf32>
    %97 = arith.addf %93, %96 : vector<16x128xf32>
    %98 = vector.extract_strided_slice %89 {offsets = [2, 0], sizes = [1, 128], strides = [1, 1]} : vector<3x128xf32> to vector<1x128xf32>
    %99 = vector.extract_strided_slice %87 {offsets = [16, 0], sizes = [16, 128], strides = [1, 1]} : vector<32x128xf32> to vector<16x128xf32>
    %100 = vector.broadcast %98 : vector<1x128xf32> to vector<16x128xf32>
    %101 = arith.mulf %100, %99 : vector<16x128xf32>
    %102 = arith.addf %97, %101 : vector<16x128xf32>
    %cst_49 = arith.constant dense<0.000000e+00> : vector<16x128xf32>
    %103 = tpu.matmul %102, %1, %cst_49 {dimension_numbers = #tpu.dot_dimension_numbers<[1], [0], [0], [1], [0, 0, 1, 1], [], []>} : vector<16x128xf32>, vector<128x128xf32>, vector<16x128xf32> -> vector<16x128xf32>
    %104 = vector.broadcast %42 : f32 to vector<16x128xf32>
    %105 = arith.addf %103, %104 : vector<16x128xf32>
    %cst_50 = arith.constant 0.000000e+00 : f32
    %106 = vector.broadcast %cst_50 : f32 to vector<16x128xf32>
    %107 = arith.cmpf oge, %105, %106 : vector<16x128xf32>
    %108 = vector.broadcast %40 : f32 to vector<16x128xf32>
    %109 = arith.mulf %108, %105 : vector<16x128xf32>
    %110 = arith.select %107, %105, %109 : vector<16x128xi1>, vector<16x128xf32>
    %c0_51 = arith.constant 0 : index
    %c0_52 = arith.constant 0 : index
    %c0_53 = arith.constant 0 : index
    %111 = vector.load %arg7[%c0_51, %c0_52, %c0_53] : memref<2x16x1xf32, #tpu.memory_space<vmem>>, vector<1x16x1xf32>
    %112 = vector.shape_cast %111 : vector<1x16x1xf32> to vector<16x1xf32>
    %c0_54 = arith.constant 0 : index
    %c0_55 = arith.constant 0 : index
    %c0_56 = arith.constant 0 : index
    %113 = vector.load %arg8[%c0_54, %c0_55, %c0_56] : memref<2x16x1xf32, #tpu.memory_space<vmem>>, vector<1x16x1xf32>
    %114 = vector.shape_cast %113 : vector<1x16x1xf32> to vector<16x1xf32>
    %115 = arith.mulf %110, %110 : vector<16x128xf32>
    %116 = tpu.concatenate %110, %115 in 0 : vector<16x128xf32>, vector<16x128xf32> -> vector<32x128xf32>
    %cst_57 = arith.constant dense<0.000000e+00> : vector<32x128xf32>
    %117 = tpu.matmul %116, %0, %cst_57 {dimension_numbers = #tpu.dot_dimension_numbers<[1], [0], [0], [1], [0, 0, 1, 1], [], []>} : vector<32x128xf32>, vector<128x128xf32>, vector<32x128xf32> -> vector<32x128xf32>
    %118 = vector.extract_strided_slice %117 {offsets = [0, 0], sizes = [16, 128], strides = [1, 1]} : vector<32x128xf32> to vector<16x128xf32>
    %cst_58 = arith.constant dense<0.000000e+00> : vector<128xf32>
    %119 = vector.multi_reduction <add>, %118, %cst_58 [0] : vector<16x128xf32> to vector<128xf32>
    %120 = vector.shape_cast %119 : vector<128xf32> to vector<1x128xf32>
    %121 = vector.extract_strided_slice %117 {offsets = [16, 0], sizes = [16, 128], strides = [1, 1]} : vector<32x128xf32> to vector<16x128xf32>
    %cst_59 = arith.constant dense<0.000000e+00> : vector<128xf32>
    %122 = vector.multi_reduction <add>, %121, %cst_59 [0] : vector<16x128xf32> to vector<128xf32>
    %123 = vector.shape_cast %122 : vector<128xf32> to vector<1x128xf32>
    %cst_60 = arith.constant 0.001953125 : f32
    %124 = vector.broadcast %cst_60 : f32 to vector<1x128xf32>
    %125 = arith.mulf %120, %124 : vector<1x128xf32>
    %cst_61 = arith.constant 0.001953125 : f32
    %126 = vector.broadcast %cst_61 : f32 to vector<1x128xf32>
    %127 = arith.mulf %123, %126 : vector<1x128xf32>
    %128 = arith.mulf %125, %125 : vector<1x128xf32>
    %129 = arith.subf %127, %128 : vector<1x128xf32>
    %cst_62 = arith.constant 0.000000e+00 : f32
    %130 = vector.broadcast %cst_62 : f32 to vector<1x128xf32>
    %131 = arith.maximumf %129, %130 : vector<1x128xf32>
    %132 = vector.broadcast %125 : vector<1x128xf32> to vector<16x128xf32>
    %133 = arith.subf %110, %132 : vector<16x128xf32>
    %cst_63 = arith.constant 9.99999993E-9 : f32
    %134 = vector.broadcast %cst_63 : f32 to vector<1x128xf32>
    %135 = arith.addf %131, %134 : vector<1x128xf32>
    %136 = math.rsqrt %135 : vector<1x128xf32>
    %137 = vector.broadcast %136 : vector<1x128xf32> to vector<16x128xf32>
    %138 = arith.mulf %133, %137 : vector<16x128xf32>
    %139 = vector.broadcast %112 : vector<16x1xf32> to vector<16x128xf32>
    %140 = arith.mulf %138, %139 : vector<16x128xf32>
    %141 = vector.broadcast %114 : vector<16x1xf32> to vector<16x128xf32>
    %142 = arith.addf %140, %141 : vector<16x128xf32>
    %c0_64 = arith.constant 0 : index
    %c0_65 = arith.constant 0 : index
    %c0_66 = arith.constant 0 : index
    %143 = vector.load %arg9[%c0_64, %c0_65, %c0_66] : memref<2x16x3xf32, #tpu.memory_space<vmem>>, vector<1x16x3xf32>
    %144 = vector.shape_cast %143 : vector<1x16x3xf32> to vector<16x3xf32>
    %c0_67 = arith.constant 0 : index
    %c0_68 = arith.constant 0 : index
    %c0_69 = arith.constant 0 : index
    %145 = vector.load %arg23[%c0_67, %c0_68, %c0_69] : memref<2x128x256xf32, #tpu.memory_space<vmem>>, vector<1x128x256xf32>
    %146 = vector.shape_cast %145 : vector<1x128x256xf32> to vector<128x256xf32>
    %cst_70 = arith.constant dense<0.000000e+00> : vector<16x256xf32>
    %147 = tpu.matmul %142, %146, %cst_70 {dimension_numbers = #tpu.dot_dimension_numbers<[1], [0], [0], [1], [0, 0, 1, 1], [], []>} : vector<16x128xf32>, vector<128x256xf32>, vector<16x256xf32> -> vector<16x256xf32>
    %148 = vector.extract_strided_slice %144 {offsets = [0, 0], sizes = [16, 1], strides = [1, 1]} : vector<16x3xf32> to vector<16x1xf32>
    %149 = vector.extract_strided_slice %147 {offsets = [0, 0], sizes = [16, 128], strides = [1, 1]} : vector<16x256xf32> to vector<16x128xf32>
    %150 = vector.broadcast %148 : vector<16x1xf32> to vector<16x128xf32>
    %151 = arith.mulf %150, %149 : vector<16x128xf32>
    %152 = vector.extract_strided_slice %144 {offsets = [0, 1], sizes = [16, 1], strides = [1, 1]} : vector<16x3xf32> to vector<16x1xf32>
    %153 = vector.broadcast %152 : vector<16x1xf32> to vector<16x128xf32>
    %154 = arith.mulf %153, %142 : vector<16x128xf32>
    %155 = arith.addf %151, %154 : vector<16x128xf32>
    %156 = vector.extract_strided_slice %144 {offsets = [0, 2], sizes = [16, 1], strides = [1, 1]} : vector<16x3xf32> to vector<16x1xf32>
    %157 = vector.extract_strided_slice %147 {offsets = [0, 128], sizes = [16, 128], strides = [1, 1]} : vector<16x256xf32> to vector<16x128xf32>
    %158 = vector.broadcast %156 : vector<16x1xf32> to vector<16x128xf32>
    %159 = arith.mulf %158, %157 : vector<16x128xf32>
    %160 = arith.addf %155, %159 : vector<16x128xf32>
    %c0_71 = arith.constant 0 : index
    %c0_72 = arith.constant 0 : index
    %c0_73 = arith.constant 0 : index
    %161 = vector.load %arg10[%c0_71, %c0_72, %c0_73] : memref<2x16x1xf32, #tpu.memory_space<vmem>>, vector<1x16x1xf32>
    %162 = vector.shape_cast %161 : vector<1x16x1xf32> to vector<16x1xf32>
    %163 = vector.broadcast %162 : vector<16x1xf32> to vector<16x128xf32>
    %164 = arith.addf %160, %163 : vector<16x128xf32>
    %cst_74 = arith.constant 0.000000e+00 : f32
    %165 = vector.broadcast %cst_74 : f32 to vector<16x128xf32>
    %166 = arith.cmpf oge, %164, %165 : vector<16x128xf32>
    %167 = vector.broadcast %41 : f32 to vector<16x128xf32>
    %168 = arith.mulf %167, %164 : vector<16x128xf32>
    %169 = arith.select %166, %164, %168 : vector<16x128xi1>, vector<16x128xf32>
    %c0_75 = arith.constant 0 : index
    %c0_76 = arith.constant 0 : index
    %c0_77 = arith.constant 0 : index
    %170 = vector.load %arg11[%c0_75, %c0_76, %c0_77] : memref<2x16x1xf32, #tpu.memory_space<vmem>>, vector<1x16x1xf32>
    %171 = vector.shape_cast %170 : vector<1x16x1xf32> to vector<16x1xf32>
    %c0_78 = arith.constant 0 : index
    %c0_79 = arith.constant 0 : index
    %c0_80 = arith.constant 0 : index
    %172 = vector.load %arg12[%c0_78, %c0_79, %c0_80] : memref<2x16x1xf32, #tpu.memory_space<vmem>>, vector<1x16x1xf32>
    %173 = vector.shape_cast %172 : vector<1x16x1xf32> to vector<16x1xf32>
    %174 = arith.mulf %169, %169 : vector<16x128xf32>
    %175 = tpu.concatenate %169, %174 in 0 : vector<16x128xf32>, vector<16x128xf32> -> vector<32x128xf32>
    %cst_81 = arith.constant dense<0.000000e+00> : vector<32x128xf32>
    %176 = tpu.matmul %175, %0, %cst_81 {dimension_numbers = #tpu.dot_dimension_numbers<[1], [0], [0], [1], [0, 0, 1, 1], [], []>} : vector<32x128xf32>, vector<128x128xf32>, vector<32x128xf32> -> vector<32x128xf32>
    %177 = vector.extract_strided_slice %176 {offsets = [0, 0], sizes = [16, 128], strides = [1, 1]} : vector<32x128xf32> to vector<16x128xf32>
    %cst_82 = arith.constant dense<0.000000e+00> : vector<128xf32>
    %178 = vector.multi_reduction <add>, %177, %cst_82 [0] : vector<16x128xf32> to vector<128xf32>
    %179 = vector.shape_cast %178 : vector<128xf32> to vector<1x128xf32>
    %180 = vector.extract_strided_slice %176 {offsets = [16, 0], sizes = [16, 128], strides = [1, 1]} : vector<32x128xf32> to vector<16x128xf32>
    %cst_83 = arith.constant dense<0.000000e+00> : vector<128xf32>
    %181 = vector.multi_reduction <add>, %180, %cst_83 [0] : vector<16x128xf32> to vector<128xf32>
    %182 = vector.shape_cast %181 : vector<128xf32> to vector<1x128xf32>
    %cst_84 = arith.constant 0.001953125 : f32
    %183 = vector.broadcast %cst_84 : f32 to vector<1x128xf32>
    %184 = arith.mulf %179, %183 : vector<1x128xf32>
    %cst_85 = arith.constant 0.001953125 : f32
    %185 = vector.broadcast %cst_85 : f32 to vector<1x128xf32>
    %186 = arith.mulf %182, %185 : vector<1x128xf32>
    %187 = arith.mulf %184, %184 : vector<1x128xf32>
    %188 = arith.subf %186, %187 : vector<1x128xf32>
    %cst_86 = arith.constant 0.000000e+00 : f32
    %189 = vector.broadcast %cst_86 : f32 to vector<1x128xf32>
    %190 = arith.maximumf %188, %189 : vector<1x128xf32>
    %191 = vector.broadcast %184 : vector<1x128xf32> to vector<16x128xf32>
    %192 = arith.subf %169, %191 : vector<16x128xf32>
    %cst_87 = arith.constant 9.99999993E-9 : f32
    %193 = vector.broadcast %cst_87 : f32 to vector<1x128xf32>
    %194 = arith.addf %190, %193 : vector<1x128xf32>
    %195 = math.rsqrt %194 : vector<1x128xf32>
    %196 = vector.broadcast %195 : vector<1x128xf32> to vector<16x128xf32>
    %197 = arith.mulf %192, %196 : vector<16x128xf32>
    %198 = vector.broadcast %171 : vector<16x1xf32> to vector<16x128xf32>
    %199 = arith.mulf %197, %198 : vector<16x128xf32>
    %200 = vector.broadcast %173 : vector<16x1xf32> to vector<16x128xf32>
    %201 = arith.addf %199, %200 : vector<16x128xf32>
    %c0_88 = arith.constant 0 : index
    %c0_89 = arith.constant 0 : index
    %c0_90 = arith.constant 0 : index
    %202 = vector.load %arg18[%c0_88, %c0_89, %c0_90] : memref<2x1x128xf32, #tpu.memory_space<vmem>>, vector<1x1x128xf32>
    %203 = vector.shape_cast %202 : vector<1x1x128xf32> to vector<1x128xf32>
    %204 = vector.broadcast %203 : vector<1x128xf32> to vector<16x128xf32>
    %205 = arith.mulf %204, %201 : vector<16x128xf32>
    %c0_91 = arith.constant 0 : index
    %c0_92 = arith.constant 0 : index
    %c0_93 = arith.constant 0 : index
    %206 = vector.load %arg19[%c0_91, %c0_92, %c0_93] : memref<2x1x128xf32, #tpu.memory_space<vmem>>, vector<1x1x128xf32>
    %207 = vector.shape_cast %206 : vector<1x1x128xf32> to vector<1x128xf32>
    %208 = vector.broadcast %207 : vector<1x128xf32> to vector<16x128xf32>
    %209 = arith.addf %205, %208 : vector<16x128xf32>
    %cst_94 = arith.constant 0.000000e+00 : f32
    %210 = vector.broadcast %cst_94 : f32 to vector<16x128xf32>
    %211 = arith.cmpf oge, %209, %210 : vector<16x128xf32>
    %212 = vector.broadcast %40 : f32 to vector<16x128xf32>
    %213 = arith.mulf %212, %209 : vector<16x128xf32>
    %214 = arith.select %211, %209, %213 : vector<16x128xi1>, vector<16x128xf32>
    %c0_95 = arith.constant 0 : index
    %c0_96 = arith.constant 0 : index
    %c0_97 = arith.constant 0 : index
    %215 = vector.load %arg7[%c0_95, %c0_96, %c0_97] : memref<2x16x1xf32, #tpu.memory_space<vmem>>, vector<1x16x1xf32>
    %216 = vector.shape_cast %215 : vector<1x16x1xf32> to vector<16x1xf32>
    %c0_98 = arith.constant 0 : index
    %c0_99 = arith.constant 0 : index
    %c0_100 = arith.constant 0 : index
    %217 = vector.load %arg8[%c0_98, %c0_99, %c0_100] : memref<2x16x1xf32, #tpu.memory_space<vmem>>, vector<1x16x1xf32>
    %218 = vector.shape_cast %217 : vector<1x16x1xf32> to vector<16x1xf32>
    %219 = arith.mulf %214, %214 : vector<16x128xf32>
    %220 = tpu.concatenate %214, %219 in 0 : vector<16x128xf32>, vector<16x128xf32> -> vector<32x128xf32>
    %cst_101 = arith.constant dense<0.000000e+00> : vector<32x128xf32>
    %221 = tpu.matmul %220, %0, %cst_101 {dimension_numbers = #tpu.dot_dimension_numbers<[1], [0], [0], [1], [0, 0, 1, 1], [], []>} : vector<32x128xf32>, vector<128x128xf32>, vector<32x128xf32> -> vector<32x128xf32>
    %222 = vector.extract_strided_slice %221 {offsets = [0, 0], sizes = [16, 128], strides = [1, 1]} : vector<32x128xf32> to vector<16x128xf32>
    %cst_102 = arith.constant dense<0.000000e+00> : vector<128xf32>
    %223 = vector.multi_reduction <add>, %222, %cst_102 [0] : vector<16x128xf32> to vector<128xf32>
    %224 = vector.shape_cast %223 : vector<128xf32> to vector<1x128xf32>
    %225 = vector.extract_strided_slice %221 {offsets = [16, 0], sizes = [16, 128], strides = [1, 1]} : vector<32x128xf32> to vector<16x128xf32>
    %cst_103 = arith.constant dense<0.000000e+00> : vector<128xf32>
    %226 = vector.multi_reduction <add>, %225, %cst_103 [0] : vector<16x128xf32> to vector<128xf32>
    %227 = vector.shape_cast %226 : vector<128xf32> to vector<1x128xf32>
    %cst_104 = arith.constant 0.001953125 : f32
    %228 = vector.broadcast %cst_104 : f32 to vector<1x128xf32>
    %229 = arith.mulf %224, %228 : vector<1x128xf32>
    %cst_105 = arith.constant 0.001953125 : f32
    %230 = vector.broadcast %cst_105 : f32 to vector<1x128xf32>
    %231 = arith.mulf %227, %230 : vector<1x128xf32>
    %232 = arith.mulf %229, %229 : vector<1x128xf32>
    %233 = arith.subf %231, %232 : vector<1x128xf32>
    %cst_106 = arith.constant 0.000000e+00 : f32
    %234 = vector.broadcast %cst_106 : f32 to vector<1x128xf32>
    %235 = arith.maximumf %233, %234 : vector<1x128xf32>
    %236 = vector.broadcast %229 : vector<1x128xf32> to vector<16x128xf32>
    %237 = arith.subf %214, %236 : vector<16x128xf32>
    %cst_107 = arith.constant 9.99999993E-9 : f32
    %238 = vector.broadcast %cst_107 : f32 to vector<1x128xf32>
    %239 = arith.addf %235, %238 : vector<1x128xf32>
    %240 = math.rsqrt %239 : vector<1x128xf32>
    %241 = vector.broadcast %240 : vector<1x128xf32> to vector<16x128xf32>
    %242 = arith.mulf %237, %241 : vector<16x128xf32>
    %243 = vector.broadcast %216 : vector<16x1xf32> to vector<16x128xf32>
    %244 = arith.mulf %242, %243 : vector<16x128xf32>
    %245 = vector.broadcast %218 : vector<16x1xf32> to vector<16x128xf32>
    %246 = arith.addf %244, %245 : vector<16x128xf32>
    %c0_108 = arith.constant 0 : index
    %c0_109 = arith.constant 0 : index
    %c0_110 = arith.constant 0 : index
    %247 = vector.load %arg13[%c0_108, %c0_109, %c0_110] : memref<2x16x16xf32, #tpu.memory_space<vmem>>, vector<1x16x16xf32>
    %248 = vector.shape_cast %247 : vector<1x16x16xf32> to vector<16x16xf32>
    %cst_111 = arith.constant dense<0.000000e+00> : vector<16x128xf32>
    %249 = tpu.matmul %248, %246, %cst_111 {dimension_numbers = #tpu.dot_dimension_numbers<[1], [0], [0], [1], [0, 0, 1, 1], [], []>} : vector<16x16xf32>, vector<16x128xf32>, vector<16x128xf32> -> vector<16x128xf32>
    %c0_112 = arith.constant 0 : index
    %c0_113 = arith.constant 0 : index
    %c0_114 = arith.constant 0 : index
    %250 = vector.load %arg14[%c0_112, %c0_113, %c0_114] : memref<2x16x1xf32, #tpu.memory_space<vmem>>, vector<1x16x1xf32>
    %251 = vector.shape_cast %250 : vector<1x16x1xf32> to vector<16x1xf32>
    %252 = vector.broadcast %251 : vector<16x1xf32> to vector<16x128xf32>
    %253 = arith.addf %249, %252 : vector<16x128xf32>
    %254 = vector.extract_strided_slice %253 {offsets = [0, 0], sizes = [8, 128], strides = [1, 1]} : vector<16x128xf32> to vector<8x128xf32>
    %255 = arith.addf %38, %254 : vector<8x128xf32>
    %256 = vector.extract_strided_slice %253 {offsets = [8, 0], sizes = [8, 128], strides = [1, 1]} : vector<16x128xf32> to vector<8x128xf32>
    %257 = arith.addf %39, %256 : vector<8x128xf32>
    %c3 = arith.constant 3 : index
    %258 = memref.load %arg24[%c3] : memref<7xf32, #tpu.memory_space<smem>>
    %c4 = arith.constant 4 : index
    %259 = memref.load %arg24[%c4] : memref<7xf32, #tpu.memory_space<smem>>
    %c5 = arith.constant 5 : index
    %260 = memref.load %arg24[%c5] : memref<7xf32, #tpu.memory_space<smem>>
    %c1_115 = arith.constant 1 : index
    %c0_116 = arith.constant 0 : index
    %c0_117 = arith.constant 0 : index
    %261 = vector.load %arg5[%c1_115, %c0_116, %c0_117] : memref<2x16x8xf32, #tpu.memory_space<vmem>>, vector<1x16x8xf32>
    %262 = vector.shape_cast %261 : vector<1x16x8xf32> to vector<16x8xf32>
    %cst_118 = arith.constant dense<0.000000e+00> : vector<16x128xf32>
    %263 = tpu.matmul %262, %255, %cst_118 {dimension_numbers = #tpu.dot_dimension_numbers<[1], [0], [0], [1], [0, 0, 1, 1], [], []>} : vector<16x8xf32>, vector<8x128xf32>, vector<16x128xf32> -> vector<16x128xf32>
    %c1_119 = arith.constant 1 : index
    %c0_120 = arith.constant 0 : index
    %c0_121 = arith.constant 0 : index
    %264 = vector.load %arg6[%c1_119, %c0_120, %c0_121] : memref<2x16x1xf32, #tpu.memory_space<vmem>>, vector<1x16x1xf32>
    %265 = vector.shape_cast %264 : vector<1x16x1xf32> to vector<16x1xf32>
    %266 = vector.broadcast %265 : vector<16x1xf32> to vector<16x128xf32>
    %267 = arith.addf %263, %266 : vector<16x128xf32>
    %cst_122 = arith.constant 0.000000e+00 : f32
    %268 = vector.broadcast %cst_122 : f32 to vector<16x128xf32>
    %269 = arith.cmpf oge, %267, %268 : vector<16x128xf32>
    %270 = vector.broadcast %258 : f32 to vector<16x128xf32>
    %271 = arith.mulf %270, %267 : vector<16x128xf32>
    %272 = arith.select %269, %267, %271 : vector<16x128xi1>, vector<16x128xf32>
    %c1_123 = arith.constant 1 : index
    %c0_124 = arith.constant 0 : index
    %c0_125 = arith.constant 0 : index
    %273 = vector.load %arg7[%c1_123, %c0_124, %c0_125] : memref<2x16x1xf32, #tpu.memory_space<vmem>>, vector<1x16x1xf32>
    %274 = vector.shape_cast %273 : vector<1x16x1xf32> to vector<16x1xf32>
    %c1_126 = arith.constant 1 : index
    %c0_127 = arith.constant 0 : index
    %c0_128 = arith.constant 0 : index
    %275 = vector.load %arg8[%c1_126, %c0_127, %c0_128] : memref<2x16x1xf32, #tpu.memory_space<vmem>>, vector<1x16x1xf32>
    %276 = vector.shape_cast %275 : vector<1x16x1xf32> to vector<16x1xf32>
    %277 = arith.mulf %272, %272 : vector<16x128xf32>
    %278 = tpu.concatenate %272, %277 in 0 : vector<16x128xf32>, vector<16x128xf32> -> vector<32x128xf32>
    %cst_129 = arith.constant dense<0.000000e+00> : vector<32x128xf32>
    %279 = tpu.matmul %278, %0, %cst_129 {dimension_numbers = #tpu.dot_dimension_numbers<[1], [0], [0], [1], [0, 0, 1, 1], [], []>} : vector<32x128xf32>, vector<128x128xf32>, vector<32x128xf32> -> vector<32x128xf32>
    %280 = vector.extract_strided_slice %279 {offsets = [0, 0], sizes = [16, 128], strides = [1, 1]} : vector<32x128xf32> to vector<16x128xf32>
    %cst_130 = arith.constant dense<0.000000e+00> : vector<128xf32>
    %281 = vector.multi_reduction <add>, %280, %cst_130 [0] : vector<16x128xf32> to vector<128xf32>
    %282 = vector.shape_cast %281 : vector<128xf32> to vector<1x128xf32>
    %283 = vector.extract_strided_slice %279 {offsets = [16, 0], sizes = [16, 128], strides = [1, 1]} : vector<32x128xf32> to vector<16x128xf32>
    %cst_131 = arith.constant dense<0.000000e+00> : vector<128xf32>
    %284 = vector.multi_reduction <add>, %283, %cst_131 [0] : vector<16x128xf32> to vector<128xf32>
    %285 = vector.shape_cast %284 : vector<128xf32> to vector<1x128xf32>
    %cst_132 = arith.constant 0.001953125 : f32
    %286 = vector.broadcast %cst_132 : f32 to vector<1x128xf32>
    %287 = arith.mulf %282, %286 : vector<1x128xf32>
    %cst_133 = arith.constant 0.001953125 : f32
    %288 = vector.broadcast %cst_133 : f32 to vector<1x128xf32>
    %289 = arith.mulf %285, %288 : vector<1x128xf32>
    %290 = arith.mulf %287, %287 : vector<1x128xf32>
    %291 = arith.subf %289, %290 : vector<1x128xf32>
    %cst_134 = arith.constant 0.000000e+00 : f32
    %292 = vector.broadcast %cst_134 : f32 to vector<1x128xf32>
    %293 = arith.maximumf %291, %292 : vector<1x128xf32>
    %294 = vector.broadcast %287 : vector<1x128xf32> to vector<16x128xf32>
    %295 = arith.subf %272, %294 : vector<16x128xf32>
    %cst_135 = arith.constant 9.99999993E-9 : f32
    %296 = vector.broadcast %cst_135 : f32 to vector<1x128xf32>
    %297 = arith.addf %293, %296 : vector<1x128xf32>
    %298 = math.rsqrt %297 : vector<1x128xf32>
    %299 = vector.broadcast %298 : vector<1x128xf32> to vector<16x128xf32>
    %300 = arith.mulf %295, %299 : vector<16x128xf32>
    %301 = vector.broadcast %274 : vector<16x1xf32> to vector<16x128xf32>
    %302 = arith.mulf %300, %301 : vector<16x128xf32>
    %303 = vector.broadcast %276 : vector<16x1xf32> to vector<16x128xf32>
    %304 = arith.addf %302, %303 : vector<16x128xf32>
    %cst_136 = arith.constant dense<0.000000e+00> : vector<32x128xf32>
    %305 = tpu.matmul %2, %304, %cst_136 {dimension_numbers = #tpu.dot_dimension_numbers<[1], [0], [0], [1], [0, 0, 1, 1], [], []>} : vector<32x16xf32>, vector<16x128xf32>, vector<32x128xf32> -> vector<32x128xf32>
    %c1_137 = arith.constant 1 : index
    %c0_138 = arith.constant 0 : index
    %c0_139 = arith.constant 0 : index
    %306 = vector.load %arg17[%c1_137, %c0_138, %c0_139] : memref<2x3x128xf32, #tpu.memory_space<vmem>>, vector<1x3x128xf32>
    %307 = vector.shape_cast %306 : vector<1x3x128xf32> to vector<3x128xf32>
    %308 = vector.extract_strided_slice %307 {offsets = [0, 0], sizes = [1, 128], strides = [1, 1]} : vector<3x128xf32> to vector<1x128xf32>
    %309 = vector.extract_strided_slice %305 {offsets = [0, 0], sizes = [16, 128], strides = [1, 1]} : vector<32x128xf32> to vector<16x128xf32>
    %310 = vector.broadcast %308 : vector<1x128xf32> to vector<16x128xf32>
    %311 = arith.mulf %310, %309 : vector<16x128xf32>
    %312 = vector.extract_strided_slice %307 {offsets = [1, 0], sizes = [1, 128], strides = [1, 1]} : vector<3x128xf32> to vector<1x128xf32>
    %313 = vector.broadcast %312 : vector<1x128xf32> to vector<16x128xf32>
    %314 = arith.mulf %313, %304 : vector<16x128xf32>
    %315 = arith.addf %311, %314 : vector<16x128xf32>
    %316 = vector.extract_strided_slice %307 {offsets = [2, 0], sizes = [1, 128], strides = [1, 1]} : vector<3x128xf32> to vector<1x128xf32>
    %317 = vector.extract_strided_slice %305 {offsets = [16, 0], sizes = [16, 128], strides = [1, 1]} : vector<32x128xf32> to vector<16x128xf32>
    %318 = vector.broadcast %316 : vector<1x128xf32> to vector<16x128xf32>
    %319 = arith.mulf %318, %317 : vector<16x128xf32>
    %320 = arith.addf %315, %319 : vector<16x128xf32>
    %cst_140 = arith.constant dense<0.000000e+00> : vector<16x128xf32>
    %321 = tpu.matmul %320, %1, %cst_140 {dimension_numbers = #tpu.dot_dimension_numbers<[1], [0], [0], [1], [0, 0, 1, 1], [], []>} : vector<16x128xf32>, vector<128x128xf32>, vector<16x128xf32> -> vector<16x128xf32>
    %322 = vector.broadcast %260 : f32 to vector<16x128xf32>
    %323 = arith.addf %321, %322 : vector<16x128xf32>
    %cst_141 = arith.constant 0.000000e+00 : f32
    %324 = vector.broadcast %cst_141 : f32 to vector<16x128xf32>
    %325 = arith.cmpf oge, %323, %324 : vector<16x128xf32>
    %326 = vector.broadcast %258 : f32 to vector<16x128xf32>
    %327 = arith.mulf %326, %323 : vector<16x128xf32>
    %328 = arith.select %325, %323, %327 : vector<16x128xi1>, vector<16x128xf32>
    %c1_142 = arith.constant 1 : index
    %c0_143 = arith.constant 0 : index
    %c0_144 = arith.constant 0 : index
    %329 = vector.load %arg7[%c1_142, %c0_143, %c0_144] : memref<2x16x1xf32, #tpu.memory_space<vmem>>, vector<1x16x1xf32>
    %330 = vector.shape_cast %329 : vector<1x16x1xf32> to vector<16x1xf32>
    %c1_145 = arith.constant 1 : index
    %c0_146 = arith.constant 0 : index
    %c0_147 = arith.constant 0 : index
    %331 = vector.load %arg8[%c1_145, %c0_146, %c0_147] : memref<2x16x1xf32, #tpu.memory_space<vmem>>, vector<1x16x1xf32>
    %332 = vector.shape_cast %331 : vector<1x16x1xf32> to vector<16x1xf32>
    %333 = arith.mulf %328, %328 : vector<16x128xf32>
    %334 = tpu.concatenate %328, %333 in 0 : vector<16x128xf32>, vector<16x128xf32> -> vector<32x128xf32>
    %cst_148 = arith.constant dense<0.000000e+00> : vector<32x128xf32>
    %335 = tpu.matmul %334, %0, %cst_148 {dimension_numbers = #tpu.dot_dimension_numbers<[1], [0], [0], [1], [0, 0, 1, 1], [], []>} : vector<32x128xf32>, vector<128x128xf32>, vector<32x128xf32> -> vector<32x128xf32>
    %336 = vector.extract_strided_slice %335 {offsets = [0, 0], sizes = [16, 128], strides = [1, 1]} : vector<32x128xf32> to vector<16x128xf32>
    %cst_149 = arith.constant dense<0.000000e+00> : vector<128xf32>
    %337 = vector.multi_reduction <add>, %336, %cst_149 [0] : vector<16x128xf32> to vector<128xf32>
    %338 = vector.shape_cast %337 : vector<128xf32> to vector<1x128xf32>
    %339 = vector.extract_strided_slice %335 {offsets = [16, 0], sizes = [16, 128], strides = [1, 1]} : vector<32x128xf32> to vector<16x128xf32>
    %cst_150 = arith.constant dense<0.000000e+00> : vector<128xf32>
    %340 = vector.multi_reduction <add>, %339, %cst_150 [0] : vector<16x128xf32> to vector<128xf32>
    %341 = vector.shape_cast %340 : vector<128xf32> to vector<1x128xf32>
    %cst_151 = arith.constant 0.001953125 : f32
    %342 = vector.broadcast %cst_151 : f32 to vector<1x128xf32>
    %343 = arith.mulf %338, %342 : vector<1x128xf32>
    %cst_152 = arith.constant 0.001953125 : f32
    %344 = vector.broadcast %cst_152 : f32 to vector<1x128xf32>
    %345 = arith.mulf %341, %344 : vector<1x128xf32>
    %346 = arith.mulf %343, %343 : vector<1x128xf32>
    %347 = arith.subf %345, %346 : vector<1x128xf32>
    %cst_153 = arith.constant 0.000000e+00 : f32
    %348 = vector.broadcast %cst_153 : f32 to vector<1x128xf32>
    %349 = arith.maximumf %347, %348 : vector<1x128xf32>
    %350 = vector.broadcast %343 : vector<1x128xf32> to vector<16x128xf32>
    %351 = arith.subf %328, %350 : vector<16x128xf32>
    %cst_154 = arith.constant 9.99999993E-9 : f32
    %352 = vector.broadcast %cst_154 : f32 to vector<1x128xf32>
    %353 = arith.addf %349, %352 : vector<1x128xf32>
    %354 = math.rsqrt %353 : vector<1x128xf32>
    %355 = vector.broadcast %354 : vector<1x128xf32> to vector<16x128xf32>
    %356 = arith.mulf %351, %355 : vector<16x128xf32>
    %357 = vector.broadcast %330 : vector<16x1xf32> to vector<16x128xf32>
    %358 = arith.mulf %356, %357 : vector<16x128xf32>
    %359 = vector.broadcast %332 : vector<16x1xf32> to vector<16x128xf32>
    %360 = arith.addf %358, %359 : vector<16x128xf32>
    %c1_155 = arith.constant 1 : index
    %c0_156 = arith.constant 0 : index
    %c0_157 = arith.constant 0 : index
    %361 = vector.load %arg9[%c1_155, %c0_156, %c0_157] : memref<2x16x3xf32, #tpu.memory_space<vmem>>, vector<1x16x3xf32>
    %362 = vector.shape_cast %361 : vector<1x16x3xf32> to vector<16x3xf32>
    %c1_158 = arith.constant 1 : index
    %c0_159 = arith.constant 0 : index
    %c0_160 = arith.constant 0 : index
    %363 = vector.load %arg23[%c1_158, %c0_159, %c0_160] : memref<2x128x256xf32, #tpu.memory_space<vmem>>, vector<1x128x256xf32>
    %364 = vector.shape_cast %363 : vector<1x128x256xf32> to vector<128x256xf32>
    %cst_161 = arith.constant dense<0.000000e+00> : vector<16x256xf32>
    %365 = tpu.matmul %360, %364, %cst_161 {dimension_numbers = #tpu.dot_dimension_numbers<[1], [0], [0], [1], [0, 0, 1, 1], [], []>} : vector<16x128xf32>, vector<128x256xf32>, vector<16x256xf32> -> vector<16x256xf32>
    %366 = vector.extract_strided_slice %362 {offsets = [0, 0], sizes = [16, 1], strides = [1, 1]} : vector<16x3xf32> to vector<16x1xf32>
    %367 = vector.extract_strided_slice %365 {offsets = [0, 0], sizes = [16, 128], strides = [1, 1]} : vector<16x256xf32> to vector<16x128xf32>
    %368 = vector.broadcast %366 : vector<16x1xf32> to vector<16x128xf32>
    %369 = arith.mulf %368, %367 : vector<16x128xf32>
    %370 = vector.extract_strided_slice %362 {offsets = [0, 1], sizes = [16, 1], strides = [1, 1]} : vector<16x3xf32> to vector<16x1xf32>
    %371 = vector.broadcast %370 : vector<16x1xf32> to vector<16x128xf32>
    %372 = arith.mulf %371, %360 : vector<16x128xf32>
    %373 = arith.addf %369, %372 : vector<16x128xf32>
    %374 = vector.extract_strided_slice %362 {offsets = [0, 2], sizes = [16, 1], strides = [1, 1]} : vector<16x3xf32> to vector<16x1xf32>
    %375 = vector.extract_strided_slice %365 {offsets = [0, 128], sizes = [16, 128], strides = [1, 1]} : vector<16x256xf32> to vector<16x128xf32>
    %376 = vector.broadcast %374 : vector<16x1xf32> to vector<16x128xf32>
    %377 = arith.mulf %376, %375 : vector<16x128xf32>
    %378 = arith.addf %373, %377 : vector<16x128xf32>
    %c1_162 = arith.constant 1 : index
    %c0_163 = arith.constant 0 : index
    %c0_164 = arith.constant 0 : index
    %379 = vector.load %arg10[%c1_162, %c0_163, %c0_164] : memref<2x16x1xf32, #tpu.memory_space<vmem>>, vector<1x16x1xf32>
    %380 = vector.shape_cast %379 : vector<1x16x1xf32> to vector<16x1xf32>
    %381 = vector.broadcast %380 : vector<16x1xf32> to vector<16x128xf32>
    %382 = arith.addf %378, %381 : vector<16x128xf32>
    %cst_165 = arith.constant 0.000000e+00 : f32
    %383 = vector.broadcast %cst_165 : f32 to vector<16x128xf32>
    %384 = arith.cmpf oge, %382, %383 : vector<16x128xf32>
    %385 = vector.broadcast %259 : f32 to vector<16x128xf32>
    %386 = arith.mulf %385, %382 : vector<16x128xf32>
    %387 = arith.select %384, %382, %386 : vector<16x128xi1>, vector<16x128xf32>
    %c1_166 = arith.constant 1 : index
    %c0_167 = arith.constant 0 : index
    %c0_168 = arith.constant 0 : index
    %388 = vector.load %arg11[%c1_166, %c0_167, %c0_168] : memref<2x16x1xf32, #tpu.memory_space<vmem>>, vector<1x16x1xf32>
    %389 = vector.shape_cast %388 : vector<1x16x1xf32> to vector<16x1xf32>
    %c1_169 = arith.constant 1 : index
    %c0_170 = arith.constant 0 : index
    %c0_171 = arith.constant 0 : index
    %390 = vector.load %arg12[%c1_169, %c0_170, %c0_171] : memref<2x16x1xf32, #tpu.memory_space<vmem>>, vector<1x16x1xf32>
    %391 = vector.shape_cast %390 : vector<1x16x1xf32> to vector<16x1xf32>
    %392 = arith.mulf %387, %387 : vector<16x128xf32>
    %393 = tpu.concatenate %387, %392 in 0 : vector<16x128xf32>, vector<16x128xf32> -> vector<32x128xf32>
    %cst_172 = arith.constant dense<0.000000e+00> : vector<32x128xf32>
    %394 = tpu.matmul %393, %0, %cst_172 {dimension_numbers = #tpu.dot_dimension_numbers<[1], [0], [0], [1], [0, 0, 1, 1], [], []>} : vector<32x128xf32>, vector<128x128xf32>, vector<32x128xf32> -> vector<32x128xf32>
    %395 = vector.extract_strided_slice %394 {offsets = [0, 0], sizes = [16, 128], strides = [1, 1]} : vector<32x128xf32> to vector<16x128xf32>
    %cst_173 = arith.constant dense<0.000000e+00> : vector<128xf32>
    %396 = vector.multi_reduction <add>, %395, %cst_173 [0] : vector<16x128xf32> to vector<128xf32>
    %397 = vector.shape_cast %396 : vector<128xf32> to vector<1x128xf32>
    %398 = vector.extract_strided_slice %394 {offsets = [16, 0], sizes = [16, 128], strides = [1, 1]} : vector<32x128xf32> to vector<16x128xf32>
    %cst_174 = arith.constant dense<0.000000e+00> : vector<128xf32>
    %399 = vector.multi_reduction <add>, %398, %cst_174 [0] : vector<16x128xf32> to vector<128xf32>
    %400 = vector.shape_cast %399 : vector<128xf32> to vector<1x128xf32>
    %cst_175 = arith.constant 0.001953125 : f32
    %401 = vector.broadcast %cst_175 : f32 to vector<1x128xf32>
    %402 = arith.mulf %397, %401 : vector<1x128xf32>
    %cst_176 = arith.constant 0.001953125 : f32
    %403 = vector.broadcast %cst_176 : f32 to vector<1x128xf32>
    %404 = arith.mulf %400, %403 : vector<1x128xf32>
    %405 = arith.mulf %402, %402 : vector<1x128xf32>
    %406 = arith.subf %404, %405 : vector<1x128xf32>
    %cst_177 = arith.constant 0.000000e+00 : f32
    %407 = vector.broadcast %cst_177 : f32 to vector<1x128xf32>
    %408 = arith.maximumf %406, %407 : vector<1x128xf32>
    %409 = vector.broadcast %402 : vector<1x128xf32> to vector<16x128xf32>
    %410 = arith.subf %387, %409 : vector<16x128xf32>
    %cst_178 = arith.constant 9.99999993E-9 : f32
    %411 = vector.broadcast %cst_178 : f32 to vector<1x128xf32>
    %412 = arith.addf %408, %411 : vector<1x128xf32>
    %413 = math.rsqrt %412 : vector<1x128xf32>
    %414 = vector.broadcast %413 : vector<1x128xf32> to vector<16x128xf32>
    %415 = arith.mulf %410, %414 : vector<16x128xf32>
    %416 = vector.broadcast %389 : vector<16x1xf32> to vector<16x128xf32>
    %417 = arith.mulf %415, %416 : vector<16x128xf32>
    %418 = vector.broadcast %391 : vector<16x1xf32> to vector<16x128xf32>
    %419 = arith.addf %417, %418 : vector<16x128xf32>
    %c1_179 = arith.constant 1 : index
    %c0_180 = arith.constant 0 : index
    %c0_181 = arith.constant 0 : index
    %420 = vector.load %arg18[%c1_179, %c0_180, %c0_181] : memref<2x1x128xf32, #tpu.memory_space<vmem>>, vector<1x1x128xf32>
    %421 = vector.shape_cast %420 : vector<1x1x128xf32> to vector<1x128xf32>
    %422 = vector.broadcast %421 : vector<1x128xf32> to vector<16x128xf32>
    %423 = arith.mulf %422, %419 : vector<16x128xf32>
    %c1_182 = arith.constant 1 : index
    %c0_183 = arith.constant 0 : index
    %c0_184 = arith.constant 0 : index
    %424 = vector.load %arg19[%c1_182, %c0_183, %c0_184] : memref<2x1x128xf32, #tpu.memory_space<vmem>>, vector<1x1x128xf32>
    %425 = vector.shape_cast %424 : vector<1x1x128xf32> to vector<1x128xf32>
    %426 = vector.broadcast %425 : vector<1x128xf32> to vector<16x128xf32>
    %427 = arith.addf %423, %426 : vector<16x128xf32>
    %cst_185 = arith.constant 0.000000e+00 : f32
    %428 = vector.broadcast %cst_185 : f32 to vector<16x128xf32>
    %429 = arith.cmpf oge, %427, %428 : vector<16x128xf32>
    %430 = vector.broadcast %258 : f32 to vector<16x128xf32>
    %431 = arith.mulf %430, %427 : vector<16x128xf32>
    %432 = arith.select %429, %427, %431 : vector<16x128xi1>, vector<16x128xf32>
    %c1_186 = arith.constant 1 : index
    %c0_187 = arith.constant 0 : index
    %c0_188 = arith.constant 0 : index
    %433 = vector.load %arg7[%c1_186, %c0_187, %c0_188] : memref<2x16x1xf32, #tpu.memory_space<vmem>>, vector<1x16x1xf32>
    %434 = vector.shape_cast %433 : vector<1x16x1xf32> to vector<16x1xf32>
    %c1_189 = arith.constant 1 : index
    %c0_190 = arith.constant 0 : index
    %c0_191 = arith.constant 0 : index
    %435 = vector.load %arg8[%c1_189, %c0_190, %c0_191] : memref<2x16x1xf32, #tpu.memory_space<vmem>>, vector<1x16x1xf32>
    %436 = vector.shape_cast %435 : vector<1x16x1xf32> to vector<16x1xf32>
    %437 = arith.mulf %432, %432 : vector<16x128xf32>
    %438 = tpu.concatenate %432, %437 in 0 : vector<16x128xf32>, vector<16x128xf32> -> vector<32x128xf32>
    %cst_192 = arith.constant dense<0.000000e+00> : vector<32x128xf32>
    %439 = tpu.matmul %438, %0, %cst_192 {dimension_numbers = #tpu.dot_dimension_numbers<[1], [0], [0], [1], [0, 0, 1, 1], [], []>} : vector<32x128xf32>, vector<128x128xf32>, vector<32x128xf32> -> vector<32x128xf32>
    %440 = vector.extract_strided_slice %439 {offsets = [0, 0], sizes = [16, 128], strides = [1, 1]} : vector<32x128xf32> to vector<16x128xf32>
    %cst_193 = arith.constant dense<0.000000e+00> : vector<128xf32>
    %441 = vector.multi_reduction <add>, %440, %cst_193 [0] : vector<16x128xf32> to vector<128xf32>
    %442 = vector.shape_cast %441 : vector<128xf32> to vector<1x128xf32>
    %443 = vector.extract_strided_slice %439 {offsets = [16, 0], sizes = [16, 128], strides = [1, 1]} : vector<32x128xf32> to vector<16x128xf32>
    %cst_194 = arith.constant dense<0.000000e+00> : vector<128xf32>
    %444 = vector.multi_reduction <add>, %443, %cst_194 [0] : vector<16x128xf32> to vector<128xf32>
    %445 = vector.shape_cast %444 : vector<128xf32> to vector<1x128xf32>
    %cst_195 = arith.constant 0.001953125 : f32
    %446 = vector.broadcast %cst_195 : f32 to vector<1x128xf32>
    %447 = arith.mulf %442, %446 : vector<1x128xf32>
    %cst_196 = arith.constant 0.001953125 : f32
    %448 = vector.broadcast %cst_196 : f32 to vector<1x128xf32>
    %449 = arith.mulf %445, %448 : vector<1x128xf32>
    %450 = arith.mulf %447, %447 : vector<1x128xf32>
    %451 = arith.subf %449, %450 : vector<1x128xf32>
    %cst_197 = arith.constant 0.000000e+00 : f32
    %452 = vector.broadcast %cst_197 : f32 to vector<1x128xf32>
    %453 = arith.maximumf %451, %452 : vector<1x128xf32>
    %454 = vector.broadcast %447 : vector<1x128xf32> to vector<16x128xf32>
    %455 = arith.subf %432, %454 : vector<16x128xf32>
    %cst_198 = arith.constant 9.99999993E-9 : f32
    %456 = vector.broadcast %cst_198 : f32 to vector<1x128xf32>
    %457 = arith.addf %453, %456 : vector<1x128xf32>
    %458 = math.rsqrt %457 : vector<1x128xf32>
    %459 = vector.broadcast %458 : vector<1x128xf32> to vector<16x128xf32>
    %460 = arith.mulf %455, %459 : vector<16x128xf32>
    %461 = vector.broadcast %434 : vector<16x1xf32> to vector<16x128xf32>
    %462 = arith.mulf %460, %461 : vector<16x128xf32>
    %463 = vector.broadcast %436 : vector<16x1xf32> to vector<16x128xf32>
    %464 = arith.addf %462, %463 : vector<16x128xf32>
    %c1_199 = arith.constant 1 : index
    %c0_200 = arith.constant 0 : index
    %c0_201 = arith.constant 0 : index
    %465 = vector.load %arg13[%c1_199, %c0_200, %c0_201] : memref<2x16x16xf32, #tpu.memory_space<vmem>>, vector<1x16x16xf32>
    %466 = vector.shape_cast %465 : vector<1x16x16xf32> to vector<16x16xf32>
    %cst_202 = arith.constant dense<0.000000e+00> : vector<16x128xf32>
    %467 = tpu.matmul %466, %464, %cst_202 {dimension_numbers = #tpu.dot_dimension_numbers<[1], [0], [0], [1], [0, 0, 1, 1], [], []>} : vector<16x16xf32>, vector<16x128xf32>, vector<16x128xf32> -> vector<16x128xf32>
    %c1_203 = arith.constant 1 : index
    %c0_204 = arith.constant 0 : index
    %c0_205 = arith.constant 0 : index
    %468 = vector.load %arg14[%c1_203, %c0_204, %c0_205] : memref<2x16x1xf32, #tpu.memory_space<vmem>>, vector<1x16x1xf32>
    %469 = vector.shape_cast %468 : vector<1x16x1xf32> to vector<16x1xf32>
    %470 = vector.broadcast %469 : vector<16x1xf32> to vector<16x128xf32>
    %471 = arith.addf %467, %470 : vector<16x128xf32>
    %472 = vector.extract_strided_slice %471 {offsets = [8, 0], sizes = [8, 128], strides = [1, 1]} : vector<16x128xf32> to vector<8x128xf32>
    %473 = arith.addf %257, %472 : vector<8x128xf32>
    %c6 = arith.constant 6 : index
    %474 = memref.load %arg24[%c6] : memref<7xf32, #tpu.memory_space<smem>>
    %c0_206 = arith.constant 0 : index
    %c0_207 = arith.constant 0 : index
    %475 = vector.load %arg15[%c0_206, %c0_207] : memref<8x8xf32, #tpu.memory_space<vmem>>, vector<8x8xf32>
    %cst_208 = arith.constant 0.000000e+00 : f32
    %476 = vector.broadcast %cst_208 : f32 to vector<8x128xf32>
    %477 = arith.cmpf oge, %473, %476 : vector<8x128xf32>
    %478 = vector.broadcast %474 : f32 to vector<8x128xf32>
    %479 = arith.mulf %478, %473 : vector<8x128xf32>
    %480 = arith.select %477, %473, %479 : vector<8x128xi1>, vector<8x128xf32>
    %cst_209 = arith.constant dense<0.000000e+00> : vector<8x128xf32>
    %481 = tpu.matmul %475, %480, %cst_209 {dimension_numbers = #tpu.dot_dimension_numbers<[1], [0], [0], [1], [0, 0, 1, 1], [], []>} : vector<8x8xf32>, vector<8x128xf32>, vector<8x128xf32> -> vector<8x128xf32>
    %c0_210 = arith.constant 0 : index
    %c0_211 = arith.constant 0 : index
    %482 = vector.load %arg16[%c0_210, %c0_211] : memref<8x1xf32, #tpu.memory_space<vmem>>, vector<8x1xf32>
    %483 = vector.broadcast %482 : vector<8x1xf32> to vector<8x128xf32>
    %484 = arith.addf %481, %483 : vector<8x128xf32>
    %c0_212 = arith.constant 0 : index
    %c0_213 = arith.constant 0 : index
    %485 = vector.load %arg25[%c0_212, %c0_213] : memref<8x128xf32, #tpu.memory_space<vmem>>, vector<8x128xf32>
    tpu.vector_store %arg25[%c0_212, %c0_213], %484 {strides = array<i32>} : memref<8x128xf32, #tpu.memory_space<vmem>>, vector<8x128xf32>,
    return
  }
}

</mosaic_0001>

<llo_original>
// kernel: tpu_custom_call.1
$region0: #{tpu_custom_call.1}
  #allocation0 [shape = 'u32[]', space=smem, size = 0x4, offset = 0x4, fixed_abs, tag = 'smem constant byte address 0x4 - core index']
  #allocation1 [shape = 'u32[72,128]{1,0:T(1,128)}', space=vmem, size = 0x9000, scoped, tag = 'internal scratch']
  %s0 = inlined_call_operand.vmem [shape: f32[8,128], index: 0, kind: input, shape index: {}]
  %s1 = inlined_call_operand.vmem [shape: f32[8,1], index: 1, kind: input, shape index: {}]
  %s2 = inlined_call_operand.vmem [shape: f32[8,1], index: 2, kind: input, shape index: {}]
  %s3 = inlined_call_operand.vmem [shape: f32[8,8], index: 3, kind: input, shape index: {}]
  %s4 = inlined_call_operand.vmem [shape: f32[8,1], index: 4, kind: input, shape index: {}]
  %s5 = inlined_call_operand.vmem [shape: f32[2,16,8], index: 5, kind: input, shape index: {}]
  %s6 = inlined_call_operand.vmem [shape: f32[2,16,1], index: 6, kind: input, shape index: {}]
  %s7 = inlined_call_operand.vmem [shape: f32[2,16,1], index: 7, kind: input, shape index: {}]
  %s8 = inlined_call_operand.vmem [shape: f32[2,16,1], index: 8, kind: input, shape index: {}]
  %s9 = inlined_call_operand.vmem [shape: f32[2,16,3], index: 9, kind: input, shape index: {}]
  %s10 = inlined_call_operand.vmem [shape: f32[2,16,1], index: 10, kind: input, shape index: {}]
  %s11 = inlined_call_operand.vmem [shape: f32[2,16,1], index: 11, kind: input, shape index: {}]
  %s12 = inlined_call_operand.vmem [shape: f32[2,16,1], index: 12, kind: input, shape index: {}]
  %s13 = inlined_call_operand.vmem [shape: f32[2,16,16], index: 13, kind: input, shape index: {}]
  %s14 = inlined_call_operand.vmem [shape: f32[2,16,1], index: 14, kind: input, shape index: {}]
  %s15 = inlined_call_operand.vmem [shape: f32[8,8], index: 15, kind: input, shape index: {}]
  %s16 = inlined_call_operand.vmem [shape: f32[8,1], index: 16, kind: input, shape index: {}]
  %s17 = inlined_call_operand.vmem [shape: f32[2,3,128], index: 17, kind: input, shape index: {}]
  %s18 = inlined_call_operand.vmem [shape: f32[2,1,128], index: 18, kind: input, shape index: {}]
  %s19 = inlined_call_operand.vmem [shape: f32[2,1,128], index: 19, kind: input, shape index: {}]
  %s20 = inlined_call_operand.hbm [shape: f32[128,128], index: 20, kind: input, shape index: {}]
  %s21 = inlined_call_operand.hbm [shape: f32[128,128], index: 21, kind: input, shape index: {}]
  %s22 = inlined_call_operand.vmem [shape: f32[32,16], index: 22, kind: input, shape index: {}]
  %s23 = inlined_call_operand.hbm [shape: f32[2,128,256], index: 23, kind: input, shape index: {}]
  %s24 = inlined_call_operand.vmem [shape: f32[7], index: 24, kind: input, shape index: {}]
  %s25 = inlined_call_operand.hbm [shape: f32[8,128], index: 25, kind: output, shape index: {}]
  %s26 = sld [smem:[#allocation0]]
  $region126: #{tpu_custom_call.1} parent=0
    _
  %s28 = ssub.s32 1, %s26
  %s29 = scalar_select 0, %s28, %s26
  $region1: #{tpu_custom_call.1} parent=0
    #allocation2 [shape = 'u8[65536]{0}', space=vmem, size = 0x10000, scoped, tag = 'input window, operand 20, single buffered']
    #allocation3 [shape = 's32[1]{0}', space=sflag, size = 0x4, scoped, tag = 'scoped memory for tpu_custom_call.1']
    #allocation4 [shape = 's32[1]{0}', space=sflag, size = 0x4, scoped, tag = 'scoped memory for tpu_custom_call.1']
    #allocation5 [shape = 's32[1]{0}', space=sflag, size = 0x4, scoped, tag = 'scoped memory for tpu_custom_call.1']
    #allocation6 [shape = 'u8[65536]{0}', space=vmem, size = 0x10000, scoped, tag = 'input window, operand 21, single buffered']
    #allocation7 [shape = 's32[1]{0}', space=sflag, size = 0x4, scoped, tag = 'scoped memory for tpu_custom_call.1']
    #allocation8 [shape = 'u8[262144]{0}', space=vmem, size = 0x40000, scoped, tag = 'input window, operand 23, single buffered']
    #allocation9 [shape = 'u8[512]{0}', space=smem, size = 0x200, scoped, tag = 'input window, operand 24, single buffered']
    #allocation10 [shape = 'u8[4096]{0}', space=vmem, size = 0x1000, scoped, tag = 'output window, operand 0, single buffered']
    %30 = vsyncpa [#allocation3], 0
    %31 = vsyncpa [#allocation7], 0
    %32 = vsyncpa [#allocation5], 0
    %33 = vsyncpa [#allocation4], 0
    // Predicated region
    $region2: #{tpu_custom_call.1} parent=1 // pred_check
      _
    $region3: #{tpu_custom_call.1} parent=1 // pred_check_branch
      %35 = sbr.rel (0) target = $region5
    $region4: #{tpu_custom_call.1} parent=1 // pred_region
      _
    $region5: #{tpu_custom_call.1} parent=1 // pred_fallthru
      _
    // Predicated region
    $region6: #{tpu_custom_call.1} parent=1 // pred_check
      _
    $region7: #{tpu_custom_call.1} parent=1 // pred_check_branch
      %37 = sbr.rel (0) target = $region9
    $region8: #{tpu_custom_call.1} parent=1 // pred_region
      _
    $region9: #{tpu_custom_call.1} parent=1 // pred_fallthru
      _
    // Predicated region
    $region10: #{tpu_custom_call.1} parent=1 // pred_check
      _
    $region11: #{tpu_custom_call.1} parent=1 // pred_check_branch
      %39 = sbr.rel (0) target = $region13
    $region12: #{tpu_custom_call.1} parent=1 // pred_region
      _
    $region13: #{tpu_custom_call.1} parent=1 // pred_fallthru
      _
    // Predicated region
    $region14: #{tpu_custom_call.1} parent=1 // pred_check
      _
    $region15: #{tpu_custom_call.1} parent=1 // pred_check_branch
      %41 = sbr.rel (0) target = $region17
    $region16: #{tpu_custom_call.1} parent=1 // pred_region
      _
    $region17: #{tpu_custom_call.1} parent=1 // pred_fallthru
      _
    // Predicated region
    $region18: #{tpu_custom_call.1} parent=1 // pred_check
      _
    $region19: #{tpu_custom_call.1} parent=1 // pred_check_branch
      %43 = sbr.rel (0) target = $region21
    $region20: #{tpu_custom_call.1} parent=1 // pred_region
      _
    $region21: #{tpu_custom_call.1} parent=1 // pred_fallthru
      _
    // Predicated region
    $region22: #{tpu_custom_call.1} parent=1 // pred_check
      _
    $region23: #{tpu_custom_call.1} parent=1 // pred_check_branch
      %45 = sbr.rel (0) target = $region25
    $region24: #{tpu_custom_call.1} parent=1 // pred_region
      _
    $region25: #{tpu_custom_call.1} parent=1 // pred_fallthru
      _
    // Predicated region
    $region26: #{tpu_custom_call.1} parent=1 // pred_check
      _
    $region27: #{tpu_custom_call.1} parent=1 // pred_check_branch
      %47 = sbr.rel (0) target = $region29
    $region28: #{tpu_custom_call.1} parent=1 // pred_region
      _
    $region29: #{tpu_custom_call.1} parent=1 // pred_fallthru
      _
    // Predicated region
    $region30: #{tpu_custom_call.1} parent=1 // pred_check
      _
    $region31: #{tpu_custom_call.1} parent=1 // pred_check_branch
      %49 = sbr.rel (0) target = $region33
    $region32: #{tpu_custom_call.1} parent=1 // pred_region
      _
    $region33: #{tpu_custom_call.1} parent=1 // pred_fallthru
      _
    // Predicated region
    $region34: #{tpu_custom_call.1} parent=1 // pred_check
      _
    $region35: #{tpu_custom_call.1} parent=1 // pred_check_branch
      %51 = sbr.rel (0) target = $region37
    $region36: #{tpu_custom_call.1} parent=1 // pred_region
      _
    $region37: #{tpu_custom_call.1} parent=1 // pred_fallthru
      _
    // Predicated region
    $region38: #{tpu_custom_call.1} parent=1 // pred_check
      _
    $region39: #{tpu_custom_call.1} parent=1 // pred_check_branch
      %53 = sbr.rel (0) target = $region41
    $region40: #{tpu_custom_call.1} parent=1 // pred_region
      _
    $region41: #{tpu_custom_call.1} parent=1 // pred_fallthru
      _
    // Predicated region
    $region42: #{tpu_custom_call.1} parent=1 // pred_check
      _
    $region43: #{tpu_custom_call.1} parent=1 // pred_check_branch
      %55 = sbr.rel (0) target = $region45
    $region44: #{tpu_custom_call.1} parent=1 // pred_region
      _
    $region45: #{tpu_custom_call.1} parent=1 // pred_fallthru
      _
    // Predicated region
    $region46: #{tpu_custom_call.1} parent=1 // pred_check
      _
    $region47: #{tpu_custom_call.1} parent=1 // pred_check_branch
      %57 = sbr.rel (0) target = $region49
    $region48: #{tpu_custom_call.1} parent=1 // pred_region
      _
    $region49: #{tpu_custom_call.1} parent=1 // pred_fallthru
      _
    // Predicated region
    $region50: #{tpu_custom_call.1} parent=1 // pred_check
      _
    $region51: #{tpu_custom_call.1} parent=1 // pred_check_branch
      %59 = sbr.rel (0) target = $region53
    $region52: #{tpu_custom_call.1} parent=1 // pred_region
      _
    $region53: #{tpu_custom_call.1} parent=1 // pred_fallthru
      _
    // Predicated region
    $region54: #{tpu_custom_call.1} parent=1 // pred_check
      _
    $region55: #{tpu_custom_call.1} parent=1 // pred_check_branch
      %61 = sbr.rel (0) target = $region57
    $region56: #{tpu_custom_call.1} parent=1 // pred_region
      _
    $region57: #{tpu_custom_call.1} parent=1 // pred_fallthru
      _
    // Predicated region
    $region58: #{tpu_custom_call.1} parent=1 // pred_check
      _
    $region59: #{tpu_custom_call.1} parent=1 // pred_check_branch
      %63 = sbr.rel (0) target = $region61
    $region60: #{tpu_custom_call.1} parent=1 // pred_region
      _
    $region61: #{tpu_custom_call.1} parent=1 // pred_fallthru
      _
    // Predicated region
    $region62: #{tpu_custom_call.1} parent=1 // pred_check
      _
    $region63: #{tpu_custom_call.1} parent=1 // pred_check_branch
      %65 = sbr.rel (0) target = $region65
    $region64: #{tpu_custom_call.1} parent=1 // pred_region
      _
    $region65: #{tpu_custom_call.1} parent=1 // pred_fallthru
      _
    // Predicated region
    $region66: #{tpu_custom_call.1} parent=1 // pred_check
      _
    $region67: #{tpu_custom_call.1} parent=1 // pred_check_branch
      %67 = sbr.rel (0) target = $region69
    $region68: #{tpu_custom_call.1} parent=1 // pred_region
      _
    $region69: #{tpu_custom_call.1} parent=1 // pred_fallthru
      _
    // Predicated region
    $region70: #{tpu_custom_call.1} parent=1 // pred_check
      _
    $region71: #{tpu_custom_call.1} parent=1 // pred_check_branch
      %69 = sbr.rel (0) target = $region73
    $region72: #{tpu_custom_call.1} parent=1 // pred_region
      _
    $region73: #{tpu_custom_call.1} parent=1 // pred_fallthru
      _
    // Predicated region
    $region74: #{tpu_custom_call.1} parent=1 // pred_check
      _
    $region75: #{tpu_custom_call.1} parent=1 // pred_check_branch
      %71 = sbr.rel (0) target = $region77
    $region76: #{tpu_custom_call.1} parent=1 // pred_region
      _
    $region77: #{tpu_custom_call.1} parent=1 // pred_fallthru
      _
    // Predicated region
    $region78: #{tpu_custom_call.1} parent=1 // pred_check
      _
    $region79: #{tpu_custom_call.1} parent=1 // pred_check_branch
      %73 = sbr.rel (0) target = $region81
    $region80: #{tpu_custom_call.1} parent=1 // pred_region
      _
    $region81: #{tpu_custom_call.1} parent=1 // pred_fallthru
      _
    // Predicated region
    $region82: #{tpu_custom_call.1} parent=1 // pred_check
      _
    $region83: #{tpu_custom_call.1} parent=1 // pred_check_branch
      %75 = sbr.rel (0) target = $region85
    $region84: #{tpu_custom_call.1} parent=1 // pred_region
      %77 = vsyncadd [#allocation3], 0
      %s78 = sshll.u32 %s20, 4
      %s79 = int_to_ptr.hbm [resolvable:$true] %s78
      %s80 = sshll.u32 [#allocation2], 4
      %s81 = int_to_ptr.vmem [resolvable:$true] %s80
      %86 = dma.hbm_to_vmem [thread:$0]  %s79, 2048, %s81, [#allocation3], 128, 128, 8
    $region85: #{tpu_custom_call.1} parent=1 // pred_fallthru
      _
    // Predicated region
    $region86: #{tpu_custom_call.1} parent=1 // pred_check
      _
    $region87: #{tpu_custom_call.1} parent=1 // pred_check_branch
      %88 = sbr.rel (0) target = $region89
    $region88: #{tpu_custom_call.1} parent=1 // pred_region
      %90 = vsyncadd [#allocation7], 0
      %s91 = sshll.u32 %s21, 4
      %s92 = int_to_ptr.hbm [resolvable:$true] %s91
      %s93 = sshll.u32 [#allocation6], 4
      %s94 = int_to_ptr.vmem [resolvable:$true] %s93
      %99 = dma.hbm_to_vmem [thread:$0]  %s92, 2048, %s94, [#allocation7], 128, 128, 8
    $region89: #{tpu_custom_call.1} parent=1 // pred_fallthru
      _
    // Predicated region
    $region90: #{tpu_custom_call.1} parent=1 // pred_check
      _
    $region91: #{tpu_custom_call.1} parent=1 // pred_check_branch
      %101 = sbr.rel (0) target = $region93
    $region92: #{tpu_custom_call.1} parent=1 // pred_region
      _
    $region93: #{tpu_custom_call.1} parent=1 // pred_fallthru
      _
    // Predicated region
    $region94: #{tpu_custom_call.1} parent=1 // pred_check
      _
    $region95: #{tpu_custom_call.1} parent=1 // pred_check_branch
      %103 = sbr.rel (0) target = $region97
    $region96: #{tpu_custom_call.1} parent=1 // pred_region
      %105 = vsyncadd [#allocation7], 0
      %s106 = sshll.u32 %s23, 4
      %s107 = int_to_ptr.hbm [resolvable:$true] %s106
      %s108 = sshll.u32 [#allocation8], 4
      %s109 = int_to_ptr.vmem [resolvable:$true] %s108
      %114 = dma.hbm_to_vmem [thread:$0]  %s107, 8192, %s109, [#allocation7], 256, 256, 16
    $region97: #{tpu_custom_call.1} parent=1 // pred_fallthru
      _
    // Predicated region
    $region98: #{tpu_custom_call.1} parent=1 // pred_check
      _
    $region99: #{tpu_custom_call.1} parent=1 // pred_check_branch
      %116 = sbr.rel (0) target = $region101
    $region100: #{tpu_custom_call.1} parent=1 // pred_region
      %118 = vsyncadd [#allocation5], 0
      %s120 = sshll.u32 %s24, 4
      %s121 = int_to_ptr.vmem [resolvable:$true] %s120
      %123 = dma.vmem_to_smem %s121, 16, [#allocation9], [#allocation5]
    $region101: #{tpu_custom_call.1} parent=1 // pred_fallthru
      _
    // Predicated region
    $region102: #{tpu_custom_call.1} parent=1 // pred_check
      _
    $region103: #{tpu_custom_call.1} parent=1 // pred_check_branch
      %125 = sbr.rel (0) target = $region105
    $region104: #{tpu_custom_call.1} parent=1 // pred_region
      %127 = dma.done [#allocation3], 2048
    $region105: #{tpu_custom_call.1} parent=1 // pred_fallthru
      _
    // Predicated region
    $region106: #{tpu_custom_call.1} parent=1 // pred_check
      _
    $region107: #{tpu_custom_call.1} parent=1 // pred_check_branch
      %129 = sbr.rel (0) target = $region109
    $region108: #{tpu_custom_call.1} parent=1 // pred_region
      %131 = dma.done [#allocation7], 2048
    $region109: #{tpu_custom_call.1} parent=1 // pred_fallthru
      _
    // Predicated region
    $region110: #{tpu_custom_call.1} parent=1 // pred_check
      _
    $region111: #{tpu_custom_call.1} parent=1 // pred_check_branch
      %133 = sbr.rel (0) target = $region113
    $region112: #{tpu_custom_call.1} parent=1 // pred_region
      %135 = dma.done [#allocation7], 8192
    $region113: #{tpu_custom_call.1} parent=1 // pred_fallthru
      _
    // Predicated region
    $region114: #{tpu_custom_call.1} parent=1 // pred_check
      _
    $region115: #{tpu_custom_call.1} parent=1 // pred_check_branch
      %137 = sbr.rel (0) target = $region117
    $region116: #{tpu_custom_call.1} parent=1 // pred_region
      %139 = dma.done [#allocation5], 16
    $region117: #{tpu_custom_call.1} parent=1 // pred_fallthru
      _
    %140 = sfence
    %v141 = vld [vmem:[#allocation2] sm:$0xff]
    %v142 = vld [vmem:[#allocation2 + $0x8] sm:$0xff]
    %v143 = vld [vmem:[#allocation2 + $0x10] sm:$0xff]
    %v144 = vld [vmem:[#allocation2 + $0x18] sm:$0xff]
    %v145 = vld [vmem:[#allocation2 + $0x20] sm:$0xff]
    %v146 = vld [vmem:[#allocation2 + $0x28] sm:$0xff]
    %v147 = vld [vmem:[#allocation2 + $0x30] sm:$0xff]
    %v148 = vld [vmem:[#allocation2 + $0x38] sm:$0xff]
    %v149 = vld [vmem:[#allocation2 + $0x40] sm:$0xff]
    %v150 = vld [vmem:[#allocation2 + $0x48] sm:$0xff]
    %v151 = vld [vmem:[#allocation2 + $0x50] sm:$0xff]
    %v152 = vld [vmem:[#allocation2 + $0x58] sm:$0xff]
    %v153 = vld [vmem:[#allocation2 + $0x60] sm:$0xff]
    %v154 = vld [vmem:[#allocation2 + $0x68] sm:$0xff]
    %v155 = vld [vmem:[#allocation2 + $0x70] sm:$0xff]
    %v156 = vld [vmem:[#allocation2 + $0x78] sm:$0xff]
    %v157 = vld [vmem:[#allocation6] sm:$0xff]
    %v158 = vld [vmem:[#allocation6 + $0x8] sm:$0xff]
    %v159 = vld [vmem:[#allocation6 + $0x10] sm:$0xff]
    %v160 = vld [vmem:[#allocation6 + $0x18] sm:$0xff]
    %v161 = vld [vmem:[#allocation6 + $0x20] sm:$0xff]
    %v162 = vld [vmem:[#allocation6 + $0x28] sm:$0xff]
    %v163 = vld [vmem:[#allocation6 + $0x30] sm:$0xff]
    %v164 = vld [vmem:[#allocation6 + $0x38] sm:$0xff]
    %v165 = vld [vmem:[#allocation6 + $0x40] sm:$0xff]
    %v166 = vld [vmem:[#allocation6 + $0x48] sm:$0xff]
    %v167 = vld [vmem:[#allocation6 + $0x50] sm:$0xff]
    %v168 = vld [vmem:[#allocation6 + $0x58] sm:$0xff]
    %v169 = vld [vmem:[#allocation6 + $0x60] sm:$0xff]
    %v170 = vld [vmem:[#allocation6 + $0x68] sm:$0xff]
    %v171 = vld [vmem:[#allocation6 + $0x70] sm:$0xff]
    %v172 = vld [vmem:[#allocation6 + $0x78] sm:$0xff]
    %v173 = vld [vmem:[%s22] sm:$0xff]
    %v174 = vld [vmem:[%s22 + $0x8] sm:$0xff]
    %v175 = vld [vmem:[%s22 + $0x10] sm:$0xff]
    %v176 = vld [vmem:[%s22 + $0x18] sm:$0xff]
    %v177 = vld [vmem:[%s0] sm:$0xff]
    %v178 = vld [vmem:[%s1] sm:$0xff]
    %v179 = vld [vmem:[%s2] sm:$0xff]
    %v180 = vmul.f32 %v177, %v177
    %181 = vmatpush.msra.mxu0 %v156
    %182 = vmatpush.msra.mxu0 %v155
    %183 = vmatpush.msra.mxu0 %v154
    %184 = vmatpush.msra.mxu0 %v153
    %185 = vmatpush.msra.mxu0 %v152
    %186 = vmatpush.msra.mxu0 %v151
    %187 = vmatpush.msra.mxu0 %v150
    %188 = vmatpush.msra.mxu0 %v149
    %189 = vmatpush.msra.mxu0 %v148
    %190 = vmatpush.msra.mxu0 %v147
    %191 = vmatpush.msra.mxu0 %v146
    %192 = vmatpush.msra.mxu0 %v145
    %193 = vmatpush.msra.mxu0 %v144
    %194 = vmatpush.msra.mxu0 %v143
    %195 = vmatpush.msra.mxu0 %v142
    %196 = vmatpush.msra.mxu0 %v141
    %197 = vmatmul.f32.gmra.mxu0 %v177
    %v198 = vpop.f32.mrf.mxu0
    %v199 = vadd.f32 0.0, %v198
    %200 = vmatmul.f32.gmra.mxu0 %v180
    %v201 = vpop.f32.mrf.mxu0
    %v202 = vadd.f32 0.0, %v201
    %203 = vdwg.mxu0
    %v204 = vrot.slane %v199, 4
    %v205 = vadd.f32 %v199, %v204
    %v206 = vrot.slane %v205, 2
    %v207 = vadd.f32 %v205, %v206
    %v208 = vrot.slane %v207, 1
    %v209 = vadd.f32 %v207, %v208
    %v210 = vrot.slane %v202, 4
    %v211 = vadd.f32 %v202, %v210
    %v212 = vrot.slane %v211, 2
    %v213 = vadd.f32 %v211, %v212
    %v214 = vrot.slane %v213, 1
    %v215 = vadd.f32 %v213, %v214
    %v216 = vmul.f32 %v209, 0.00390625
    %v217 = vmul.f32 %v215, 0.00390625
    %v218 = vmul.f32 %v216, %v216
    %v219 = vsub.f32 %v217, %v218
    %v220 = vmax.f32 %v219, 0.0
    %v221 = vsub.f32 %v177, %v216
    %v222 = vadd.f32 %v220, 1e-08
    %v223 = vrsqrt.pop %v222
    %v224 = vmul.f32 %v223, %v222
    %v225 = vmul.f32 %v224, %v223
    %v226 = vmul.f32 0.5, %v225
    %v227 = vsub.f32 1.5, %v226
    %v228 = vmul.f32 %v223, %v227
    %vm229 = vweird.f32 %v222
    %vm230 = vweird.f32 %v223
    %vm231 = vmor %vm229, %vm230
    %v232 = vsel %vm231, %v223, %v228
    %v233 = vmul.f32 %v221, %v232
    %235 = vset.pattern.permute.xlu0 0
    %236 = vperm.xlu0 %235, %v178
    %v237 = vpop.permute.xlu0 %236
    %v239 = vmul.f32 %v233, %v237
    %241 = vset.pattern.permute.xlu0 0
    %242 = vperm.xlu0 %241, %v179
    %v243 = vpop.permute.xlu0 %242
    %v245 = vadd.f32 %v239, %v243
    %v246 = vld [vmem:[%s3] sm:$0xff]
    %v247 = vld [vmem:[%s4] sm:$0xff]
    %249 = vset.pattern.permute.xlu0 0
    %250 = vperm.xlu0 %249, %v247
    %v251 = vpop.permute.xlu0 %250
    %vm253 = vcmask 64512
    %v255 = vsel %vm253, %v246, 0
    %257 = vmatpush.msra.mxu0 0.0
    %258 = vmatpush.msra.mxu0 0.0
    %259 = vmatpush.msra.mxu0 0.0
    %260 = vmatpush.msra.mxu0 0.0
    %261 = vmatpush.msra.mxu0 0.0
    %262 = vmatpush.msra.mxu0 0.0
    %263 = vmatpush.msra.mxu0 0.0
    %264 = vmatpush.msra.mxu0 0.0
    %265 = vmatpush.msra.mxu0 0.0
    %266 = vmatpush.msra.mxu0 0.0
    %267 = vmatpush.msra.mxu0 0.0
    %268 = vmatpush.msra.mxu0 0.0
    %269 = vmatpush.msra.mxu0 0.0
    %270 = vmatpush.msra.mxu0 0.0
    %271 = vmatpush.msra.mxu0 0.0
    %272 = vmatpush.msra.mxu0 %v245
    %273 = vmatmul.f32.gmra.mxu0 %v255
    %v274 = vpop.f32.mrf.mxu0
    %v275 = vadd.f32 %v251, %v274
    %276 = vdwg.mxu0
    %s277 = sld [smem:[#allocation9]]
    %s278 = sld [smem:[#allocation9 + $0x1]]
    %s279 = sld [smem:[#allocation9 + $0x2]]
    %v280 = vld [vmem:[%s5] sm:$0xff]
    %v281 = vld [vmem:[%s5 + $0x8] sm:$0xff]
    %v282 = vld [vmem:[%s6] sm:$0xff]
    %v283 = vld [vmem:[%s6 + $0x8] sm:$0xff]
    %285 = vset.pattern.permute.xlu0 0
    %286 = vperm.xlu0 %285, %v282
    %v287 = vpop.permute.xlu0 %286
    %290 = vset.pattern.permute.xlu0 0
    %291 = vperm.xlu0 %290, %v283
    %v292 = vpop.permute.xlu0 %291
    %v295 = vsel %vm253, %v280, 0
    %v298 = vsel %vm253, %v281, 0
    %300 = vmatpush.msra.mxu0 0.0
    %301 = vmatpush.msra.mxu0 0.0
    %302 = vmatpush.msra.mxu0 0.0
    %303 = vmatpush.msra.mxu0 0.0
    %304 = vmatpush.msra.mxu0 0.0
    %305 = vmatpush.msra.mxu0 0.0
    %306 = vmatpush.msra.mxu0 0.0
    %307 = vmatpush.msra.mxu0 0.0
    %308 = vmatpush.msra.mxu0 0.0
    %309 = vmatpush.msra.mxu0 0.0
    %310 = vmatpush.msra.mxu0 0.0
    %311 = vmatpush.msra.mxu0 0.0
    %312 = vmatpush.msra.mxu0 0.0
    %313 = vmatpush.msra.mxu0 0.0
    %314 = vmatpush.msra.mxu0 0.0
    %315 = vmatpush.msra.mxu0 %v275
    %316 = vmatmul.f32.gmra.mxu0 %v295
    %v317 = vpop.f32.mrf.mxu0
    %v318 = vadd.f32 %v287, %v317
    %319 = vmatmul.f32.gmra.mxu0 %v298
    %v320 = vpop.f32.mrf.mxu0
    %v321 = vadd.f32 %v292, %v320
    %322 = vdwg.mxu0
    %vm323 = vcmp.ge.f32.partialorder %v318, 0.0
    %vm324 = vcmp.ge.f32.partialorder %v321, 0.0
    %v325 = vstv %s277
    %v326 = vmul.f32 %v325, %v318
    %v327 = vmul.f32 %v325, %v321
    %v328 = vsel %vm323, %v318, %v326
    %v329 = vsel %vm324, %v321, %v327
    %v330 = vld [vmem:[%s7] sm:$0xff]
    %v331 = vld [vmem:[%s7 + $0x8] sm:$0xff]
    %v332 = vld [vmem:[%s8] sm:$0xff]
    %v333 = vld [vmem:[%s8 + $0x8] sm:$0xff]
    %v334 = vmul.f32 %v328, %v328
    %v335 = vmul.f32 %v329, %v329
    %336 = vmatpush.msra.mxu0 %v156
    %337 = vmatpush.msra.mxu0 %v155
    %338 = vmatpush.msra.mxu0 %v154
    %339 = vmatpush.msra.mxu0 %v153
    %340 = vmatpush.msra.mxu0 %v152
    %341 = vmatpush.msra.mxu0 %v151
    %342 = vmatpush.msra.mxu0 %v150
    %343 = vmatpush.msra.mxu0 %v149
    %344 = vmatpush.msra.mxu0 %v148
    %345 = vmatpush.msra.mxu0 %v147
    %346 = vmatpush.msra.mxu0 %v146
    %347 = vmatpush.msra.mxu0 %v145
    %348 = vmatpush.msra.mxu0 %v144
    %349 = vmatpush.msra.mxu0 %v143
    %350 = vmatpush.msra.mxu0 %v142
    %351 = vmatpush.msra.mxu0 %v141
    %352 = vmatmul.f32.gmra.mxu0 %v328
    %v353 = vpop.f32.mrf.mxu0
    %v354 = vadd.f32 0.0, %v353
    %355 = vmatmul.f32.gmra.mxu0 %v329
    %v356 = vpop.f32.mrf.mxu0
    %v357 = vadd.f32 0.0, %v356
    %358 = vmatmul.f32.gmra.mxu0 %v334
    %v359 = vpop.f32.mrf.mxu0
    %v360 = vadd.f32 0.0, %v359
    %361 = vmatmul.f32.gmra.mxu0 %v335
    %v362 = vpop.f32.mrf.mxu0
    %v363 = vadd.f32 0.0, %v362
    %364 = vdwg.mxu0
    %v365 = vadd.f32 %v354, %v357
    %v366 = vrot.slane %v365, 4
    %v367 = vadd.f32 %v365, %v366
    %v368 = vrot.slane %v367, 2
    %v369 = vadd.f32 %v367, %v368
    %v370 = vrot.slane %v369, 1
    %v371 = vadd.f32 %v369, %v370
    %v372 = vadd.f32 %v360, %v363
    %v373 = vrot.slane %v372, 4
    %v374 = vadd.f32 %v372, %v373
    %v375 = vrot.slane %v374, 2
    %v376 = vadd.f32 %v374, %v375
    %v377 = vrot.slane %v376, 1
    %v378 = vadd.f32 %v376, %v377
    %v379 = vmul.f32 %v371, 0.001953125
    %v380 = vmul.f32 %v378, 0.001953125
    %v381 = vmul.f32 %v379, %v379
    %v382 = vsub.f32 %v380, %v381
    %v383 = vmax.f32 %v382, 0.0
    %v384 = vsub.f32 %v328, %v379
    %v385 = vsub.f32 %v329, %v379
    %v386 = vadd.f32 %v383, 1e-08
    %v387 = vrsqrt.pop %v386
    %v388 = vmul.f32 %v387, %v386
    %v389 = vmul.f32 %v388, %v387
    %v390 = vmul.f32 0.5, %v389
    %v391 = vsub.f32 1.5, %v390
    %v392 = vmul.f32 %v387, %v391
    %vm393 = vweird.f32 %v386
    %vm394 = vweird.f32 %v387
    %vm395 = vmor %vm393, %vm394
    %v396 = vsel %vm395, %v387, %v392
    %v397 = vmul.f32 %v384, %v396
    %v398 = vmul.f32 %v385, %v396
    %400 = vset.pattern.permute.xlu0 0
    %401 = vperm.xlu0 %400, %v330
    %v402 = vpop.permute.xlu0 %401
    %405 = vset.pattern.permute.xlu0 0
    %406 = vperm.xlu0 %405, %v331
    %v407 = vpop.permute.xlu0 %406
    %v409 = vmul.f32 %v397, %v402
    %v410 = vmul.f32 %v398, %v407
    %412 = vset.pattern.permute.xlu0 0
    %413 = vperm.xlu0 %412, %v332
    %v414 = vpop.permute.xlu0 %413
    %417 = vset.pattern.permute.xlu0 0
    %418 = vperm.xlu0 %417, %v333
    %v419 = vpop.permute.xlu0 %418
    %v421 = vadd.f32 %v409, %v414
    %v422 = vadd.f32 %v410, %v419
    %vm423 = vcmask 130048
    %v425 = vsel %vm423, %v173, 0
    %v428 = vsel %vm423, %v174, 0
    %v431 = vsel %vm423, %v175, 0
    %v434 = vsel %vm423, %v176, 0
    %436 = vmatpush.msra.mxu0 0.0
    %437 = vmatpush.msra.mxu0 0.0
    %438 = vmatpush.msra.mxu0 0.0
    %439 = vmatpush.msra.mxu0 0.0
    %440 = vmatpush.msra.mxu0 0.0
    %441 = vmatpush.msra.mxu0 0.0
    %442 = vmatpush.msra.mxu0 0.0
    %443 = vmatpush.msra.mxu0 0.0
    %444 = vmatpush.msra.mxu0 0.0
    %445 = vmatpush.msra.mxu0 0.0
    %446 = vmatpush.msra.mxu0 0.0
    %447 = vmatpush.msra.mxu0 0.0
    %448 = vmatpush.msra.mxu0 0.0
    %449 = vmatpush.msra.mxu0 0.0
    %450 = vmatpush.msra.mxu0 %v422
    %451 = vmatpush.msra.mxu0 %v421
    %452 = vmatmul.f32.gmra.mxu0 %v425
    %v453 = vpop.f32.mrf.mxu0
    %v454 = vadd.f32 0.0, %v453
    %455 = vmatmul.f32.gmra.mxu0 %v428
    %v456 = vpop.f32.mrf.mxu0
    %v457 = vadd.f32 0.0, %v456
    %458 = vmatmul.f32.gmra.mxu0 %v431
    %v459 = vpop.f32.mrf.mxu0
    %v460 = vadd.f32 0.0, %v459
    %461 = vmatmul.f32.gmra.mxu0 %v434
    %v462 = vpop.f32.mrf.mxu0
    %v463 = vadd.f32 0.0, %v462
    %464 = vdwg.mxu0
    %v465 = vld [vmem:[%s17] sm:$0x7]
    %v466 = vperm.slane %v465, 0
    %v467 = vmul.f32 %v466, %v454
    %v468 = vmul.f32 %v466, %v457
    %v469 = vperm.slane %v465, 1
    %v470 = vmul.f32 %v469, %v421
    %v471 = vmul.f32 %v469, %v422
    %v472 = vadd.f32 %v467, %v470
    %v473 = vadd.f32 %v468, %v471
    %v474 = vperm.slane %v465, 2
    %v475 = vmul.f32 %v474, %v460
    %v476 = vmul.f32 %v474, %v463
    %v477 = vadd.f32 %v472, %v475
    %v478 = vadd.f32 %v473, %v476
    %v479 = vstv %s279
    %480 = vmatpush.msra.mxu0 %v172
    %481 = vmatpush.msra.mxu0 %v171
    %482 = vmatpush.msra.mxu0 %v170
    %483 = vmatpush.msra.mxu0 %v169
    %484 = vmatpush.msra.mxu0 %v168
    %485 = vmatpush.msra.mxu0 %v167
    %486 = vmatpush.msra.mxu0 %v166
    %487 = vmatpush.msra.mxu0 %v165
    %488 = vmatpush.msra.mxu0 %v164
    %489 = vmatpush.msra.mxu0 %v163
    %490 = vmatpush.msra.mxu0 %v162
    %491 = vmatpush.msra.mxu0 %v161
    %492 = vmatpush.msra.mxu0 %v160
    %493 = vmatpush.msra.mxu0 %v159
    %494 = vmatpush.msra.mxu0 %v158
    %495 = vmatpush.msra.mxu0 %v157
    %496 = vmatmul.f32.gmra.mxu0 %v477
    %v497 = vpop.f32.mrf.mxu0
    %v498 = vadd.f32 %v479, %v497
    %499 = vmatmul.f32.gmra.mxu0 %v478
    %v500 = vpop.f32.mrf.mxu0
    %v501 = vadd.f32 %v479, %v500
    %502 = vdwg.mxu0
    %vm503 = vcmp.ge.f32.partialorder %v498, 0.0
    %vm504 = vcmp.ge.f32.partialorder %v501, 0.0
    %v505 = vmul.f32 %v325, %v498
    %v506 = vmul.f32 %v325, %v501
    %v507 = vsel %vm503, %v498, %v505
    %v508 = vsel %vm504, %v501, %v506
    %v509 = vmul.f32 %v507, %v507
    %v510 = vmul.f32 %v508, %v508
    %511 = vmatpush.msra.mxu0 %v156
    %512 = vmatpush.msra.mxu0 %v155
    %513 = vmatpush.msra.mxu0 %v154
    %514 = vmatpush.msra.mxu0 %v153
    %515 = vmatpush.msra.mxu0 %v152
    %516 = vmatpush.msra.mxu0 %v151
    %517 = vmatpush.msra.mxu0 %v150
    %518 = vmatpush.msra.mxu0 %v149
    %519 = vmatpush.msra.mxu0 %v148
    %520 = vmatpush.msra.mxu0 %v147
    %521 = vmatpush.msra.mxu0 %v146
    %522 = vmatpush.msra.mxu0 %v145
    %523 = vmatpush.msra.mxu0 %v144
    %524 = vmatpush.msra.mxu0 %v143
    %525 = vmatpush.msra.mxu0 %v142
    %526 = vmatpush.msra.mxu0 %v141
    %527 = vmatmul.f32.gmra.mxu0 %v507
    %v528 = vpop.f32.mrf.mxu0
    %v529 = vadd.f32 0.0, %v528
    %530 = vmatmul.f32.gmra.mxu0 %v508
    %v531 = vpop.f32.mrf.mxu0
    %v532 = vadd.f32 0.0, %v531
    %533 = vmatmul.f32.gmra.mxu0 %v509
    %v534 = vpop.f32.mrf.mxu0
    %v535 = vadd.f32 0.0, %v534
    %536 = vmatmul.f32.gmra.mxu0 %v510
    %v537 = vpop.f32.mrf.mxu0
    %v538 = vadd.f32 0.0, %v537
    %539 = vdwg.mxu0
    %v540 = vadd.f32 %v529, %v532
    %v541 = vrot.slane %v540, 4
    %v542 = vadd.f32 %v540, %v541
    %v543 = vrot.slane %v542, 2
    %v544 = vadd.f32 %v542, %v543
    %v545 = vrot.slane %v544, 1
    %v546 = vadd.f32 %v544, %v545
    %v547 = vadd.f32 %v535, %v538
    %v548 = vrot.slane %v547, 4
    %v549 = vadd.f32 %v547, %v548
    %v550 = vrot.slane %v549, 2
    %v551 = vadd.f32 %v549, %v550
    %v552 = vrot.slane %v551, 1
    %v553 = vadd.f32 %v551, %v552
    %v554 = vmul.f32 %v546, 0.001953125
    %v555 = vmul.f32 %v553, 0.001953125
    %v556 = vmul.f32 %v554, %v554
    %v557 = vsub.f32 %v555, %v556
    %v558 = vmax.f32 %v557, 0.0
    %v559 = vsub.f32 %v507, %v554
    %v560 = vsub.f32 %v508, %v554
    %v561 = vadd.f32 %v558, 1e-08
    %v562 = vrsqrt.pop %v561
    %v563 = vmul.f32 %v562, %v561
    %v564 = vmul.f32 %v563, %v562
    %v565 = vmul.f32 0.5, %v564
    %v566 = vsub.f32 1.5, %v565
    %v567 = vmul.f32 %v562, %v566
    %vm568 = vweird.f32 %v561
    %vm569 = vweird.f32 %v562
    %vm570 = vmor %vm568, %vm569
    %v571 = vsel %vm570, %v562, %v567
    %v572 = vmul.f32 %v559, %v571
    %v573 = vmul.f32 %v560, %v571
    %v574 = vmul.f32 %v572, %v402
    %v575 = vmul.f32 %v573, %v407
    %v576 = vadd.f32 %v574, %v414
    %v577 = vadd.f32 %v575, %v419
    %v578 = vld [vmem:[%s9] sm:$0xff]
    %v579 = vld [vmem:[%s9 + $0x8] sm:$0xff]
    %v580 = vld [vmem:[#allocation8] sm:$0xff]
    %v581 = vld [vmem:[#allocation8 + $0x8] sm:$0xff]
    %v582 = vld [vmem:[#allocation8 + $0x10] sm:$0xff]
    %v583 = vld [vmem:[#allocation8 + $0x18] sm:$0xff]
    %v584 = vld [vmem:[#allocation8 + $0x20] sm:$0xff]
    %v585 = vld [vmem:[#allocation8 + $0x28] sm:$0xff]
    %v586 = vld [vmem:[#allocation8 + $0x30] sm:$0xff]
    %v587 = vld [vmem:[#allocation8 + $0x38] sm:$0xff]
    %v588 = vld [vmem:[#allocation8 + $0x40] sm:$0xff]
    %v589 = vld [vmem:[#allocation8 + $0x48] sm:$0xff]
    %v590 = vld [vmem:[#allocation8 + $0x50] sm:$0xff]
    %v591 = vld [vmem:[#allocation8 + $0x58] sm:$0xff]
    %v592 = vld [vmem:[#allocation8 + $0x60] sm:$0xff]
    %v593 = vld [vmem:[#allocation8 + $0x68] sm:$0xff]
    %v594 = vld [vmem:[#allocation8 + $0x70] sm:$0xff]
    %v595 = vld [vmem:[#allocation8 + $0x78] sm:$0xff]
    %v596 = vld [vmem:[#allocation8 + $0x80] sm:$0xff]
    %v597 = vld [vmem:[#allocation8 + $0x88] sm:$0xff]
    %v598 = vld [vmem:[#allocation8 + $0x90] sm:$0xff]
    %v599 = vld [vmem:[#allocation8 + $0x98] sm:$0xff]
    %v600 = vld [vmem:[#allocation8 + $0xa0] sm:$0xff]
    %v601 = vld [vmem:[#allocation8 + $0xa8] sm:$0xff]
    %v602 = vld [vmem:[#allocation8 + $0xb0] sm:$0xff]
    %v603 = vld [vmem:[#allocation8 + $0xb8] sm:$0xff]
    %v604 = vld [vmem:[#allocation8 + $0xc0] sm:$0xff]
    %v605 = vld [vmem:[#allocation8 + $0xc8] sm:$0xff]
    %v606 = vld [vmem:[#allocation8 + $0xd0] sm:$0xff]
    %v607 = vld [vmem:[#allocation8 + $0xd8] sm:$0xff]
    %v608 = vld [vmem:[#allocation8 + $0xe0] sm:$0xff]
    %v609 = vld [vmem:[#allocation8 + $0xe8] sm:$0xff]
    %v610 = vld [vmem:[#allocation8 + $0xf0] sm:$0xff]
    %v611 = vld [vmem:[#allocation8 + $0xf8] sm:$0xff]
    %612 = vmatpush.msra.mxu0 %v610
    %613 = vmatpush.msra.mxu0 %v608
    %614 = vmatpush.msra.mxu0 %v606
    %615 = vmatpush.msra.mxu0 %v604
    %616 = vmatpush.msra.mxu0 %v602
    %617 = vmatpush.msra.mxu0 %v600
    %618 = vmatpush.msra.mxu0 %v598
    %619 = vmatpush.msra.mxu0 %v596
    %620 = vmatpush.msra.mxu0 %v594
    %621 = vmatpush.msra.mxu0 %v592
    %622 = vmatpush.msra.mxu0 %v590
    %623 = vmatpush.msra.mxu0 %v588
    %624 = vmatpush.msra.mxu0 %v586
    %625 = vmatpush.msra.mxu0 %v584
    %626 = vmatpush.msra.mxu0 %v582
    %627 = vmatpush.msra.mxu0 %v580
    %628 = vmatmul.f32.gmra.mxu0 %v576
    %v629 = vpop.f32.mrf.mxu0
    %v630 = vadd.f32 0.0, %v629
    %631 = vmatmul.f32.gmra.mxu0 %v577
    %v632 = vpop.f32.mrf.mxu0
    %v633 = vadd.f32 0.0, %v632
    %634 = vdwg.mxu0
    %635 = vmatpush.msra.mxu0 %v611
    %636 = vmatpush.msra.mxu0 %v609
    %637 = vmatpush.msra.mxu0 %v607
    %638 = vmatpush.msra.mxu0 %v605
    %639 = vmatpush.msra.mxu0 %v603
    %640 = vmatpush.msra.mxu0 %v601
    %641 = vmatpush.msra.mxu0 %v599
    %642 = vmatpush.msra.mxu0 %v597
    %643 = vmatpush.msra.mxu0 %v595
    %644 = vmatpush.msra.mxu0 %v593
    %645 = vmatpush.msra.mxu0 %v591
    %646 = vmatpush.msra.mxu0 %v589
    %647 = vmatpush.msra.mxu0 %v587
    %648 = vmatpush.msra.mxu0 %v585
    %649 = vmatpush.msra.mxu0 %v583
    %650 = vmatpush.msra.mxu0 %v581
    %651 = vmatmul.f32.gmra.mxu0 %v576
    %v652 = vpop.f32.mrf.mxu0
    %v653 = vadd.f32 0.0, %v652
    %654 = vmatmul.f32.gmra.mxu0 %v577
    %v655 = vpop.f32.mrf.mxu0
    %v656 = vadd.f32 0.0, %v655
    %657 = vdwg.mxu0
    %659 = vset.pattern.permute.xlu0 0
    %660 = vperm.xlu0 %659, %v578
    %v661 = vpop.permute.xlu0 %660
    %664 = vset.pattern.permute.xlu0 0
    %665 = vperm.xlu0 %664, %v579
    %v666 = vpop.permute.xlu0 %665
    %v668 = vmul.f32 %v661, %v630
    %v669 = vmul.f32 %v666, %v633
    %670 = vset.pattern.permute.xlu0 1
    %671 = vperm.xlu0 %670, %v578
    %v672 = vpop.permute.xlu0 %671
    %674 = vset.pattern.permute.xlu0 1
    %675 = vperm.xlu0 %674, %v579
    %v676 = vpop.permute.xlu0 %675
    %v678 = vmul.f32 %v672, %v576
    %v679 = vmul.f32 %v676, %v577
    %v680 = vadd.f32 %v668, %v678
    %v681 = vadd.f32 %v669, %v679
    %682 = vset.pattern.permute.xlu0 2
    %683 = vperm.xlu0 %682, %v578
    %v684 = vpop.permute.xlu0 %683
    %686 = vset.pattern.permute.xlu0 2
    %687 = vperm.xlu0 %686, %v579
    %v688 = vpop.permute.xlu0 %687
    %v690 = vmul.f32 %v684, %v653
    %v691 = vmul.f32 %v688, %v656
    %v692 = vadd.f32 %v680, %v690
    %v693 = vadd.f32 %v681, %v691
    %v694 = vld [vmem:[%s10] sm:$0xff]
    %v695 = vld [vmem:[%s10 + $0x8] sm:$0xff]
    %697 = vset.pattern.permute.xlu0 0
    %698 = vperm.xlu0 %697, %v694
    %v699 = vpop.permute.xlu0 %698
    %702 = vset.pattern.permute.xlu0 0
    %703 = vperm.xlu0 %702, %v695
    %v704 = vpop.permute.xlu0 %703
    %v706 = vadd.f32 %v692, %v699
    %v707 = vadd.f32 %v693, %v704
    %vm708 = vcmp.ge.f32.partialorder %v706, 0.0
    %vm709 = vcmp.ge.f32.partialorder %v707, 0.0
    %v710 = vstv %s278
    %v711 = vmul.f32 %v710, %v706
    %v712 = vmul.f32 %v710, %v707
    %v713 = vsel %vm708, %v706, %v711
    %v714 = vsel %vm709, %v707, %v712
    %v715 = vld [vmem:[%s11] sm:$0xff]
    %v716 = vld [vmem:[%s11 + $0x8] sm:$0xff]
    %v717 = vld [vmem:[%s12] sm:$0xff]
    %v718 = vld [vmem:[%s12 + $0x8] sm:$0xff]
    %v719 = vmul.f32 %v713, %v713
    %v720 = vmul.f32 %v714, %v714
    %721 = vmatpush.msra.mxu0 %v156
    %722 = vmatpush.msra.mxu0 %v155
    %723 = vmatpush.msra.mxu0 %v154
    %724 = vmatpush.msra.mxu0 %v153
    %725 = vmatpush.msra.mxu0 %v152
    %726 = vmatpush.msra.mxu0 %v151
    %727 = vmatpush.msra.mxu0 %v150
    %728 = vmatpush.msra.mxu0 %v149
    %729 = vmatpush.msra.mxu0 %v148
    %730 = vmatpush.msra.mxu0 %v147
    %731 = vmatpush.msra.mxu0 %v146
    %732 = vmatpush.msra.mxu0 %v145
    %733 = vmatpush.msra.mxu0 %v144
    %734 = vmatpush.msra.mxu0 %v143
    %735 = vmatpush.msra.mxu0 %v142
    %736 = vmatpush.msra.mxu0 %v141
    %737 = vmatmul.f32.gmra.mxu0 %v713
    %v738 = vpop.f32.mrf.mxu0
    %v739 = vadd.f32 0.0, %v738
    %740 = vmatmul.f32.gmra.mxu0 %v714
    %v741 = vpop.f32.mrf.mxu0
    %v742 = vadd.f32 0.0, %v741
    %743 = vmatmul.f32.gmra.mxu0 %v719
    %v744 = vpop.f32.mrf.mxu0
    %v745 = vadd.f32 0.0, %v744
    %746 = vmatmul.f32.gmra.mxu0 %v720
    %v747 = vpop.f32.mrf.mxu0
    %v748 = vadd.f32 0.0, %v747
    %749 = vdwg.mxu0
    %v750 = vadd.f32 %v739, %v742
    %v751 = vrot.slane %v750, 4
    %v752 = vadd.f32 %v750, %v751
    %v753 = vrot.slane %v752, 2
    %v754 = vadd.f32 %v752, %v753
    %v755 = vrot.slane %v754, 1
    %v756 = vadd.f32 %v754, %v755
    %v757 = vadd.f32 %v745, %v748
    %v758 = vrot.slane %v757, 4
    %v759 = vadd.f32 %v757, %v758
    %v760 = vrot.slane %v759, 2
    %v761 = vadd.f32 %v759, %v760
    %v762 = vrot.slane %v761, 1
    %v763 = vadd.f32 %v761, %v762
    %v764 = vmul.f32 %v756, 0.001953125
    %v765 = vmul.f32 %v763, 0.001953125
    %v766 = vmul.f32 %v764, %v764
    %v767 = vsub.f32 %v765, %v766
    %v768 = vmax.f32 %v767, 0.0
    %v769 = vsub.f32 %v713, %v764
    %v770 = vsub.f32 %v714, %v764
    %v771 = vadd.f32 %v768, 1e-08
    %v772 = vrsqrt.pop %v771
    %v773 = vmul.f32 %v772, %v771
    %v774 = vmul.f32 %v773, %v772
    %v775 = vmul.f32 0.5, %v774
    %v776 = vsub.f32 1.5, %v775
    %v777 = vmul.f32 %v772, %v776
    %vm778 = vweird.f32 %v771
    %vm779 = vweird.f32 %v772
    %vm780 = vmor %vm778, %vm779
    %v781 = vsel %vm780, %v772, %v777
    %v782 = vmul.f32 %v769, %v781
    %v783 = vmul.f32 %v770, %v781
    %785 = vset.pattern.permute.xlu0 0
    %786 = vperm.xlu0 %785, %v715
    %v787 = vpop.permute.xlu0 %786
    %790 = vset.pattern.permute.xlu0 0
    %791 = vperm.xlu0 %790, %v716
    %v792 = vpop.permute.xlu0 %791
    %v794 = vmul.f32 %v782, %v787
    %v795 = vmul.f32 %v783, %v792
    %797 = vset.pattern.permute.xlu0 0
    %798 = vperm.xlu0 %797, %v717
    %v799 = vpop.permute.xlu0 %798
    %802 = vset.pattern.permute.xlu0 0
    %803 = vperm.xlu0 %802, %v718
    %v804 = vpop.permute.xlu0 %803
    %v806 = vadd.f32 %v794, %v799
    %v807 = vadd.f32 %v795, %v804
    %v808 = vld [vmem:[%s18] sm:$0x1]
    %v810 = vperm.slane %v808, 0
    %v812 = vmul.f32 %v810, %v806
    %v813 = vmul.f32 %v810, %v807
    %v814 = vld [vmem:[%s19] sm:$0x1]
    %v816 = vperm.slane %v814, 0
    %v818 = vadd.f32 %v812, %v816
    %v819 = vadd.f32 %v813, %v816
    %vm820 = vcmp.ge.f32.partialorder %v818, 0.0
    %vm821 = vcmp.ge.f32.partialorder %v819, 0.0
    %v822 = vmul.f32 %v325, %v818
    %v823 = vmul.f32 %v325, %v819
    %v824 = vsel %vm820, %v818, %v822
    %v825 = vsel %vm821, %v819, %v823
    %v826 = vmul.f32 %v824, %v824
    %v827 = vmul.f32 %v825, %v825
    %828 = vmatpush.msra.mxu0 %v156
    %829 = vmatpush.msra.mxu0 %v155
    %830 = vmatpush.msra.mxu0 %v154
    %831 = vmatpush.msra.mxu0 %v153
    %832 = vmatpush.msra.mxu0 %v152
    %833 = vmatpush.msra.mxu0 %v151
    %834 = vmatpush.msra.mxu0 %v150
    %835 = vmatpush.msra.mxu0 %v149
    %836 = vmatpush.msra.mxu0 %v148
    %837 = vmatpush.msra.mxu0 %v147
    %838 = vmatpush.msra.mxu0 %v146
    %839 = vmatpush.msra.mxu0 %v145
    %840 = vmatpush.msra.mxu0 %v144
    %841 = vmatpush.msra.mxu0 %v143
    %842 = vmatpush.msra.mxu0 %v142
    %843 = vmatpush.msra.mxu0 %v141
    %844 = vmatmul.f32.gmra.mxu0 %v824
    %v845 = vpop.f32.mrf.mxu0
    %v846 = vadd.f32 0.0, %v845
    %847 = vmatmul.f32.gmra.mxu0 %v825
    %v848 = vpop.f32.mrf.mxu0
    %v849 = vadd.f32 0.0, %v848
    %850 = vmatmul.f32.gmra.mxu0 %v826
    %v851 = vpop.f32.mrf.mxu0
    %v852 = vadd.f32 0.0, %v851
    %853 = vmatmul.f32.gmra.mxu0 %v827
    %v854 = vpop.f32.mrf.mxu0
    %v855 = vadd.f32 0.0, %v854
    %856 = vdwg.mxu0
    %v857 = vadd.f32 %v846, %v849
    %v858 = vrot.slane %v857, 4
    %v859 = vadd.f32 %v857, %v858
    %v860 = vrot.slane %v859, 2
    %v861 = vadd.f32 %v859, %v860
    %v862 = vrot.slane %v861, 1
    %v863 = vadd.f32 %v861, %v862
    %v864 = vadd.f32 %v852, %v855
    %v865 = vrot.slane %v864, 4
    %v866 = vadd.f32 %v864, %v865
    %v867 = vrot.slane %v866, 2
    %v868 = vadd.f32 %v866, %v867
    %v869 = vrot.slane %v868, 1
    %v870 = vadd.f32 %v868, %v869
    %v871 = vmul.f32 %v863, 0.001953125
    %v872 = vmul.f32 %v870, 0.001953125
    %v873 = vmul.f32 %v871, %v871
    %v874 = vsub.f32 %v872, %v873
    %v875 = vmax.f32 %v874, 0.0
    %v876 = vsub.f32 %v824, %v871
    %v877 = vsub.f32 %v825, %v871
    %v878 = vadd.f32 %v875, 1e-08
    %v879 = vrsqrt.pop %v878
    %v880 = vmul.f32 %v879, %v878
    %v881 = vmul.f32 %v880, %v879
    %v882 = vmul.f32 0.5, %v881
    %v883 = vsub.f32 1.5, %v882
    %v884 = vmul.f32 %v879, %v883
    %vm885 = vweird.f32 %v878
    %vm886 = vweird.f32 %v879
    %vm887 = vmor %vm885, %vm886
    %v888 = vsel %vm887, %v879, %v884
    %v889 = vmul.f32 %v876, %v888
    %v890 = vmul.f32 %v877, %v888
    %v891 = vmul.f32 %v889, %v402
    %v892 = vmul.f32 %v890, %v407
    %v893 = vadd.f32 %v891, %v414
    %v894 = vadd.f32 %v892, %v419
    %v895 = vld [vmem:[%s13] sm:$0xff]
    %v896 = vld [vmem:[%s13 + $0x8] sm:$0xff]
    %v897 = vld [vmem:[%s14] sm:$0xff]
    %v898 = vld [vmem:[%s14 + $0x8] sm:$0xff]
    %900 = vset.pattern.permute.xlu0 0
    %901 = vperm.xlu0 %900, %v897
    %v902 = vpop.permute.xlu0 %901
    %905 = vset.pattern.permute.xlu0 0
    %906 = vperm.xlu0 %905, %v898
    %v907 = vpop.permute.xlu0 %906
    %v910 = vsel %vm423, %v895, 0
    %v913 = vsel %vm423, %v896, 0
    %915 = vmatpush.msra.mxu0 0.0
    %916 = vmatpush.msra.mxu0 0.0
    %917 = vmatpush.msra.mxu0 0.0
    %918 = vmatpush.msra.mxu0 0.0
    %919 = vmatpush.msra.mxu0 0.0
    %920 = vmatpush.msra.mxu0 0.0
    %921 = vmatpush.msra.mxu0 0.0
    %922 = vmatpush.msra.mxu0 0.0
    %923 = vmatpush.msra.mxu0 0.0
    %924 = vmatpush.msra.mxu0 0.0
    %925 = vmatpush.msra.mxu0 0.0
    %926 = vmatpush.msra.mxu0 0.0
    %927 = vmatpush.msra.mxu0 0.0
    %928 = vmatpush.msra.mxu0 0.0
    %929 = vmatpush.msra.mxu0 %v894
    %930 = vmatpush.msra.mxu0 %v893
    %931 = vmatmul.f32.gmra.mxu0 %v910
    %v932 = vpop.f32.mrf.mxu0
    %v933 = vadd.f32 %v902, %v932
    %934 = vmatmul.f32.gmra.mxu0 %v913
    %v935 = vpop.f32.mrf.mxu0
    %v936 = vadd.f32 %v907, %v935
    %937 = vdwg.mxu0
    %v938 = vadd.f32 %v275, %v933
    %v939 = vadd.f32 %v936, 0.0
    %s940 = sld [smem:[#allocation9 + $0x3]]
    %s941 = sld [smem:[#allocation9 + $0x4]]
    %s942 = sld [smem:[#allocation9 + $0x5]]
    %s943 = scalar_lea.vmem %s5, 16
    %v944 = vld [vmem:[%s943] sm:$0xff]
    %v945 = vld [vmem:[%s943 + $0x8] sm:$0xff]
    %s946 = scalar_lea.vmem %s6, 16
    %v947 = vld [vmem:[%s946] sm:$0xff]
    %v948 = vld [vmem:[%s946 + $0x8] sm:$0xff]
    %950 = vset.pattern.permute.xlu0 0
    %951 = vperm.xlu0 %950, %v947
    %v952 = vpop.permute.xlu0 %951
    %955 = vset.pattern.permute.xlu0 0
    %956 = vperm.xlu0 %955, %v948
    %v957 = vpop.permute.xlu0 %956
    %v960 = vsel %vm253, %v944, 0
    %v963 = vsel %vm253, %v945, 0
    %965 = vmatpush.msra.mxu0 0.0
    %966 = vmatpush.msra.mxu0 0.0
    %967 = vmatpush.msra.mxu0 0.0
    %968 = vmatpush.msra.mxu0 0.0
    %969 = vmatpush.msra.mxu0 0.0
    %970 = vmatpush.msra.mxu0 0.0
    %971 = vmatpush.msra.mxu0 0.0
    %972 = vmatpush.msra.mxu0 0.0
    %973 = vmatpush.msra.mxu0 0.0
    %974 = vmatpush.msra.mxu0 0.0
    %975 = vmatpush.msra.mxu0 0.0
    %976 = vmatpush.msra.mxu0 0.0
    %977 = vmatpush.msra.mxu0 0.0
    %978 = vmatpush.msra.mxu0 0.0
    %979 = vmatpush.msra.mxu0 0.0
    %980 = vmatpush.msra.mxu0 %v938
    %981 = vmatmul.f32.gmra.mxu0 %v960
    %v982 = vpop.f32.mrf.mxu0
    %v983 = vadd.f32 %v952, %v982
    %984 = vmatmul.f32.gmra.mxu0 %v963
    %v985 = vpop.f32.mrf.mxu0
    %v986 = vadd.f32 %v957, %v985
    %987 = vdwg.mxu0
    %vm988 = vcmp.ge.f32.partialorder %v983, 0.0
    %vm989 = vcmp.ge.f32.partialorder %v986, 0.0
    %v990 = vstv %s940
    %v991 = vmul.f32 %v990, %v983
    %v992 = vmul.f32 %v990, %v986
    %v993 = vsel %vm988, %v983, %v991
    %v994 = vsel %vm989, %v986, %v992
    %s995 = scalar_lea.vmem %s7, 16
    %v996 = vld [vmem:[%s995] sm:$0xff]
    %v997 = vld [vmem:[%s995 + $0x8] sm:$0xff]
    %s998 = scalar_lea.vmem %s8, 16
    %v999 = vld [vmem:[%s998] sm:$0xff]
    %v1000 = vld [vmem:[%s998 + $0x8] sm:$0xff]
    %v1001 = vmul.f32 %v993, %v993
    %v1002 = vmul.f32 %v994, %v994
    %1003 = vmatpush.msra.mxu0 %v156
    %1004 = vmatpush.msra.mxu0 %v155
    %1005 = vmatpush.msra.mxu0 %v154
    %1006 = vmatpush.msra.mxu0 %v153
    %1007 = vmatpush.msra.mxu0 %v152
    %1008 = vmatpush.msra.mxu0 %v151
    %1009 = vmatpush.msra.mxu0 %v150
    %1010 = vmatpush.msra.mxu0 %v149
    %1011 = vmatpush.msra.mxu0 %v148
    %1012 = vmatpush.msra.mxu0 %v147
    %1013 = vmatpush.msra.mxu0 %v146
    %1014 = vmatpush.msra.mxu0 %v145
    %1015 = vmatpush.msra.mxu0 %v144
    %1016 = vmatpush.msra.mxu0 %v143
    %1017 = vmatpush.msra.mxu0 %v142
    %1018 = vmatpush.msra.mxu0 %v141
    %1019 = vmatmul.f32.gmra.mxu0 %v993
    %v1020 = vpop.f32.mrf.mxu0
    %v1021 = vadd.f32 0.0, %v1020
    %1022 = vmatmul.f32.gmra.mxu0 %v994
    %v1023 = vpop.f32.mrf.mxu0
    %v1024 = vadd.f32 0.0, %v1023
    %1025 = vmatmul.f32.gmra.mxu0 %v1001
    %v1026 = vpop.f32.mrf.mxu0
    %v1027 = vadd.f32 0.0, %v1026
    %1028 = vmatmul.f32.gmra.mxu0 %v1002
    %v1029 = vpop.f32.mrf.mxu0
    %v1030 = vadd.f32 0.0, %v1029
    %1031 = vdwg.mxu0
    %v1032 = vadd.f32 %v1021, %v1024
    %v1033 = vrot.slane %v1032, 4
    %v1034 = vadd.f32 %v1032, %v1033
    %v1035 = vrot.slane %v1034, 2
    %v1036 = vadd.f32 %v1034, %v1035
    %v1037 = vrot.slane %v1036, 1
    %v1038 = vadd.f32 %v1036, %v1037
    %v1039 = vadd.f32 %v1027, %v1030
    %v1040 = vrot.slane %v1039, 4
    %v1041 = vadd.f32 %v1039, %v1040
    %v1042 = vrot.slane %v1041, 2
    %v1043 = vadd.f32 %v1041, %v1042
    %v1044 = vrot.slane %v1043, 1
    %v1045 = vadd.f32 %v1043, %v1044
    %v1046 = vmul.f32 %v1038, 0.001953125
    %v1047 = vmul.f32 %v1045, 0.001953125
    %v1048 = vmul.f32 %v1046, %v1046
    %v1049 = vsub.f32 %v1047, %v1048
    %v1050 = vmax.f32 %v1049, 0.0
    %v1051 = vsub.f32 %v993, %v1046
    %v1052 = vsub.f32 %v994, %v1046
    %v1053 = vadd.f32 %v1050, 1e-08
    %v1054 = vrsqrt.pop %v1053
    %v1055 = vmul.f32 %v1054, %v1053
    %v1056 = vmul.f32 %v1055, %v1054
    %v1057 = vmul.f32 0.5, %v1056
    %v1058 = vsub.f32 1.5, %v1057
    %v1059 = vmul.f32 %v1054, %v1058
    %vm1060 = vweird.f32 %v1053
    %vm1061 = vweird.f32 %v1054
    %vm1062 = vmor %vm1060, %vm1061
    %v1063 = vsel %vm1062, %v1054, %v1059
    %v1064 = vmul.f32 %v1051, %v1063
    %v1065 = vmul.f32 %v1052, %v1063
    %1067 = vset.pattern.permute.xlu0 0
    %1068 = vperm.xlu0 %1067, %v996
    %v1069 = vpop.permute.xlu0 %1068
    %1072 = vset.pattern.permute.xlu0 0
    %1073 = vperm.xlu0 %1072, %v997
    %v1074 = vpop.permute.xlu0 %1073
    %v1076 = vmul.f32 %v1064, %v1069
    %v1077 = vmul.f32 %v1065, %v1074
    %1079 = vset.pattern.permute.xlu0 0
    %1080 = vperm.xlu0 %1079, %v999
    %v1081 = vpop.permute.xlu0 %1080
    %1084 = vset.pattern.permute.xlu0 0
    %1085 = vperm.xlu0 %1084, %v1000
    %v1086 = vpop.permute.xlu0 %1085
    %v1088 = vadd.f32 %v1076, %v1081
    %v1089 = vadd.f32 %v1077, %v1086
    %1090 = vmatpush.msra.mxu0 0.0
    %1091 = vmatpush.msra.mxu0 0.0
    %1092 = vmatpush.msra.mxu0 0.0
    %1093 = vmatpush.msra.mxu0 0.0
    %1094 = vmatpush.msra.mxu0 0.0
    %1095 = vmatpush.msra.mxu0 0.0
    %1096 = vmatpush.msra.mxu0 0.0
    %1097 = vmatpush.msra.mxu0 0.0
    %1098 = vmatpush.msra.mxu0 0.0
    %1099 = vmatpush.msra.mxu0 0.0
    %1100 = vmatpush.msra.mxu0 0.0
    %1101 = vmatpush.msra.mxu0 0.0
    %1102 = vmatpush.msra.mxu0 0.0
    %1103 = vmatpush.msra.mxu0 0.0
    %1104 = vmatpush.msra.mxu0 %v1089
    %1105 = vmatpush.msra.mxu0 %v1088
    %1106 = vmatmul.f32.gmra.mxu0 %v425
    %v1107 = vpop.f32.mrf.mxu0
    %v1108 = vadd.f32 0.0, %v1107
    %1109 = vmatmul.f32.gmra.mxu0 %v428
    %v1110 = vpop.f32.mrf.mxu0
    %v1111 = vadd.f32 0.0, %v1110
    %1112 = vmatmul.f32.gmra.mxu0 %v431
    %v1113 = vpop.f32.mrf.mxu0
    %v1114 = vadd.f32 0.0, %v1113
    %1115 = vmatmul.f32.gmra.mxu0 %v434
    %v1116 = vpop.f32.mrf.mxu0
    %v1117 = vadd.f32 0.0, %v1116
    %1118 = vdwg.mxu0
    %s1119 = scalar_lea.vmem %s17, 4
    %v1120 = vld [vmem:[%s1119] sm:$0x7]
    %v1121 = vperm.slane %v1120, 0
    %v1122 = vmul.f32 %v1121, %v1108
    %v1123 = vmul.f32 %v1121, %v1111
    %v1124 = vperm.slane %v1120, 1
    %v1125 = vmul.f32 %v1124, %v1088
    %v1126 = vmul.f32 %v1124, %v1089
    %v1127 = vadd.f32 %v1122, %v1125
    %v1128 = vadd.f32 %v1123, %v1126
    %v1129 = vperm.slane %v1120, 2
    %v1130 = vmul.f32 %v1129, %v1114
    %v1131 = vmul.f32 %v1129, %v1117
    %v1132 = vadd.f32 %v1127, %v1130
    %v1133 = vadd.f32 %v1128, %v1131
    %v1134 = vstv %s942
    %1135 = vmatpush.msra.mxu0 %v172
    %1136 = vmatpush.msra.mxu0 %v171
    %1137 = vmatpush.msra.mxu0 %v170
    %1138 = vmatpush.msra.mxu0 %v169
    %1139 = vmatpush.msra.mxu0 %v168
    %1140 = vmatpush.msra.mxu0 %v167
    %1141 = vmatpush.msra.mxu0 %v166
    %1142 = vmatpush.msra.mxu0 %v165
    %1143 = vmatpush.msra.mxu0 %v164
    %1144 = vmatpush.msra.mxu0 %v163
    %1145 = vmatpush.msra.mxu0 %v162
    %1146 = vmatpush.msra.mxu0 %v161
    %1147 = vmatpush.msra.mxu0 %v160
    %1148 = vmatpush.msra.mxu0 %v159
    %1149 = vmatpush.msra.mxu0 %v158
    %1150 = vmatpush.msra.mxu0 %v157
    %1151 = vmatmul.f32.gmra.mxu0 %v1132
    %v1152 = vpop.f32.mrf.mxu0
    %v1153 = vadd.f32 %v1134, %v1152
    %1154 = vmatmul.f32.gmra.mxu0 %v1133
    %v1155 = vpop.f32.mrf.mxu0
    %v1156 = vadd.f32 %v1134, %v1155
    %1157 = vdwg.mxu0
    %vm1158 = vcmp.ge.f32.partialorder %v1153, 0.0
    %vm1159 = vcmp.ge.f32.partialorder %v1156, 0.0
    %v1160 = vmul.f32 %v990, %v1153
    %v1161 = vmul.f32 %v990, %v1156
    %v1162 = vsel %vm1158, %v1153, %v1160
    %v1163 = vsel %vm1159, %v1156, %v1161
    %v1164 = vmul.f32 %v1162, %v1162
    %v1165 = vmul.f32 %v1163, %v1163
    %1166 = vmatpush.msra.mxu0 %v156
    %1167 = vmatpush.msra.mxu0 %v155
    %1168 = vmatpush.msra.mxu0 %v154
    %1169 = vmatpush.msra.mxu0 %v153
    %1170 = vmatpush.msra.mxu0 %v152
    %1171 = vmatpush.msra.mxu0 %v151
    %1172 = vmatpush.msra.mxu0 %v150
    %1173 = vmatpush.msra.mxu0 %v149
    %1174 = vmatpush.msra.mxu0 %v148
    %1175 = vmatpush.msra.mxu0 %v147
    %1176 = vmatpush.msra.mxu0 %v146
    %1177 = vmatpush.msra.mxu0 %v145
    %1178 = vmatpush.msra.mxu0 %v144
    %1179 = vmatpush.msra.mxu0 %v143
    %1180 = vmatpush.msra.mxu0 %v142
    %1181 = vmatpush.msra.mxu0 %v141
    %1182 = vmatmul.f32.gmra.mxu0 %v1162
    %v1183 = vpop.f32.mrf.mxu0
    %v1184 = vadd.f32 0.0, %v1183
    %1185 = vmatmul.f32.gmra.mxu0 %v1163
    %v1186 = vpop.f32.mrf.mxu0
    %v1187 = vadd.f32 0.0, %v1186
    %1188 = vmatmul.f32.gmra.mxu0 %v1164
    %v1189 = vpop.f32.mrf.mxu0
    %v1190 = vadd.f32 0.0, %v1189
    %1191 = vmatmul.f32.gmra.mxu0 %v1165
    %v1192 = vpop.f32.mrf.mxu0
    %v1193 = vadd.f32 0.0, %v1192
    %1194 = vdwg.mxu0
    %v1195 = vadd.f32 %v1184, %v1187
    %v1196 = vrot.slane %v1195, 4
    %v1197 = vadd.f32 %v1195, %v1196
    %v1198 = vrot.slane %v1197, 2
    %v1199 = vadd.f32 %v1197, %v1198
    %v1200 = vrot.slane %v1199, 1
    %v1201 = vadd.f32 %v1199, %v1200
    %v1202 = vadd.f32 %v1190, %v1193
    %v1203 = vrot.slane %v1202, 4
    %v1204 = vadd.f32 %v1202, %v1203
    %v1205 = vrot.slane %v1204, 2
    %v1206 = vadd.f32 %v1204, %v1205
    %v1207 = vrot.slane %v1206, 1
    %v1208 = vadd.f32 %v1206, %v1207
    %v1209 = vmul.f32 %v1201, 0.001953125
    %v1210 = vmul.f32 %v1208, 0.001953125
    %v1211 = vmul.f32 %v1209, %v1209
    %v1212 = vsub.f32 %v1210, %v1211
    %v1213 = vmax.f32 %v1212, 0.0
    %v1214 = vsub.f32 %v1162, %v1209
    %v1215 = vsub.f32 %v1163, %v1209
    %v1216 = vadd.f32 %v1213, 1e-08
    %v1217 = vrsqrt.pop %v1216
    %v1218 = vmul.f32 %v1217, %v1216
    %v1219 = vmul.f32 %v1218, %v1217
    %v1220 = vmul.f32 0.5, %v1219
    %v1221 = vsub.f32 1.5, %v1220
    %v1222 = vmul.f32 %v1217, %v1221
    %vm1223 = vweird.f32 %v1216
    %vm1224 = vweird.f32 %v1217
    %vm1225 = vmor %vm1223, %vm1224
    %v1226 = vsel %vm1225, %v1217, %v1222
    %v1227 = vmul.f32 %v1214, %v1226
    %v1228 = vmul.f32 %v1215, %v1226
    %v1229 = vmul.f32 %v1227, %v1069
    %v1230 = vmul.f32 %v1228, %v1074
    %v1231 = vadd.f32 %v1229, %v1081
    %v1232 = vadd.f32 %v1230, %v1086
    %s1233 = scalar_lea.vmem %s9, 16
    %v1234 = vld [vmem:[%s1233] sm:$0xff]
    %v1235 = vld [vmem:[%s1233 + $0x8] sm:$0xff]
    %s1236 = scalar_lea.vmem [#allocation8], 256
    %v1237 = vld [vmem:[%s1236] sm:$0xff]
    %v1238 = vld [vmem:[%s1236 + $0x8] sm:$0xff]
    %v1239 = vld [vmem:[%s1236 + $0x10] sm:$0xff]
    %v1240 = vld [vmem:[%s1236 + $0x18] sm:$0xff]
    %v1241 = vld [vmem:[%s1236 + $0x20] sm:$0xff]
    %v1242 = vld [vmem:[%s1236 + $0x28] sm:$0xff]
    %v1243 = vld [vmem:[%s1236 + $0x30] sm:$0xff]
    %v1244 = vld [vmem:[%s1236 + $0x38] sm:$0xff]
    %v1245 = vld [vmem:[%s1236 + $0x40] sm:$0xff]
    %v1246 = vld [vmem:[%s1236 + $0x48] sm:$0xff]
    %v1247 = vld [vmem:[%s1236 + $0x50] sm:$0xff]
    %v1248 = vld [vmem:[%s1236 + $0x58] sm:$0xff]
    %v1249 = vld [vmem:[%s1236 + $0x60] sm:$0xff]
    %v1250 = vld [vmem:[%s1236 + $0x68] sm:$0xff]
    %v1251 = vld [vmem:[%s1236 + $0x70] sm:$0xff]
    %v1252 = vld [vmem:[%s1236 + $0x78] sm:$0xff]
    %v1253 = vld [vmem:[%s1236 + $0x80] sm:$0xff]
    %v1254 = vld [vmem:[%s1236 + $0x88] sm:$0xff]
    %v1255 = vld [vmem:[%s1236 + $0x90] sm:$0xff]
    %v1256 = vld [vmem:[%s1236 + $0x98] sm:$0xff]
    %v1257 = vld [vmem:[%s1236 + $0xa0] sm:$0xff]
    %v1258 = vld [vmem:[%s1236 + $0xa8] sm:$0xff]
    %v1259 = vld [vmem:[%s1236 + $0xb0] sm:$0xff]
    %v1260 = vld [vmem:[%s1236 + $0xb8] sm:$0xff]
    %v1261 = vld [vmem:[%s1236 + $0xc0] sm:$0xff]
    %v1262 = vld [vmem:[%s1236 + $0xc8] sm:$0xff]
    %v1263 = vld [vmem:[%s1236 + $0xd0] sm:$0xff]
    %v1264 = vld [vmem:[%s1236 + $0xd8] sm:$0xff]
    %v1265 = vld [vmem:[%s1236 + $0xe0] sm:$0xff]
    %v1266 = vld [vmem:[%s1236 + $0xe8] sm:$0xff]
    %v1267 = vld [vmem:[%s1236 + $0xf0] sm:$0xff]
    %v1268 = vld [vmem:[%s1236 + $0xf8] sm:$0xff]
    %1269 = vmatpush.msra.mxu0 %v1267
    %1270 = vmatpush.msra.mxu0 %v1265
    %1271 = vmatpush.msra.mxu0 %v1263
    %1272 = vmatpush.msra.mxu0 %v1261
    %1273 = vmatpush.msra.mxu0 %v1259
    %1274 = vmatpush.msra.mxu0 %v1257
    %1275 = vmatpush.msra.mxu0 %v1255
    %1276 = vmatpush.msra.mxu0 %v1253
    %1277 = vmatpush.msra.mxu0 %v1251
    %1278 = vmatpush.msra.mxu0 %v1249
    %1279 = vmatpush.msra.mxu0 %v1247
    %1280 = vmatpush.msra.mxu0 %v1245
    %1281 = vmatpush.msra.mxu0 %v1243
    %1282 = vmatpush.msra.mxu0 %v1241
    %1283 = vmatpush.msra.mxu0 %v1239
    %1284 = vmatpush.msra.mxu0 %v1237
    %1285 = vmatmul.f32.gmra.mxu0 %v1231
    %v1286 = vpop.f32.mrf.mxu0
    %v1287 = vadd.f32 0.0, %v1286
    %1288 = vmatmul.f32.gmra.mxu0 %v1232
    %v1289 = vpop.f32.mrf.mxu0
    %v1290 = vadd.f32 0.0, %v1289
    %1291 = vdwg.mxu0
    %1292 = vmatpush.msra.mxu0 %v1268
    %1293 = vmatpush.msra.mxu0 %v1266
    %1294 = vmatpush.msra.mxu0 %v1264
    %1295 = vmatpush.msra.mxu0 %v1262
    %1296 = vmatpush.msra.mxu0 %v1260
    %1297 = vmatpush.msra.mxu0 %v1258
    %1298 = vmatpush.msra.mxu0 %v1256
    %1299 = vmatpush.msra.mxu0 %v1254
    %1300 = vmatpush.msra.mxu0 %v1252
    %1301 = vmatpush.msra.mxu0 %v1250
    %1302 = vmatpush.msra.mxu0 %v1248
    %1303 = vmatpush.msra.mxu0 %v1246
    %1304 = vmatpush.msra.mxu0 %v1244
    %1305 = vmatpush.msra.mxu0 %v1242
    %1306 = vmatpush.msra.mxu0 %v1240
    %1307 = vmatpush.msra.mxu0 %v1238
    %1308 = vmatmul.f32.gmra.mxu0 %v1231
    %v1309 = vpop.f32.mrf.mxu0
    %v1310 = vadd.f32 0.0, %v1309
    %1311 = vmatmul.f32.gmra.mxu0 %v1232
    %v1312 = vpop.f32.mrf.mxu0
    %v1313 = vadd.f32 0.0, %v1312
    %1314 = vdwg.mxu0
    %1316 = vset.pattern.permute.xlu0 0
    %1317 = vperm.xlu0 %1316, %v1234
    %v1318 = vpop.permute.xlu0 %1317
    %1321 = vset.pattern.permute.xlu0 0
    %1322 = vperm.xlu0 %1321, %v1235
    %v1323 = vpop.permute.xlu0 %1322
    %v1325 = vmul.f32 %v1318, %v1287
    %v1326 = vmul.f32 %v1323, %v1290
    %1327 = vset.pattern.permute.xlu0 1
    %1328 = vperm.xlu0 %1327, %v1234
    %v1329 = vpop.permute.xlu0 %1328
    %1331 = vset.pattern.permute.xlu0 1
    %1332 = vperm.xlu0 %1331, %v1235
    %v1333 = vpop.permute.xlu0 %1332
    %v1335 = vmul.f32 %v1329, %v1231
    %v1336 = vmul.f32 %v1333, %v1232
    %v1337 = vadd.f32 %v1325, %v1335
    %v1338 = vadd.f32 %v1326, %v1336
    %1339 = vset.pattern.permute.xlu0 2
    %1340 = vperm.xlu0 %1339, %v1234
    %v1341 = vpop.permute.xlu0 %1340
    %1343 = vset.pattern.permute.xlu0 2
    %1344 = vperm.xlu0 %1343, %v1235
    %v1345 = vpop.permute.xlu0 %1344
    %v1347 = vmul.f32 %v1341, %v1310
    %v1348 = vmul.f32 %v1345, %v1313
    %v1349 = vadd.f32 %v1337, %v1347
    %v1350 = vadd.f32 %v1338, %v1348
    %s1351 = scalar_lea.vmem %s10, 16
    %v1352 = vld [vmem:[%s1351] sm:$0xff]
    %v1353 = vld [vmem:[%s1351 + $0x8] sm:$0xff]
    %1355 = vset.pattern.permute.xlu0 0
    %1356 = vperm.xlu0 %1355, %v1352
    %v1357 = vpop.permute.xlu0 %1356
    %1360 = vset.pattern.permute.xlu0 0
    %1361 = vperm.xlu0 %1360, %v1353
    %v1362 = vpop.permute.xlu0 %1361
    %v1364 = vadd.f32 %v1349, %v1357
    %v1365 = vadd.f32 %v1350, %v1362
    %vm1366 = vcmp.ge.f32.partialorder %v1364, 0.0
    %vm1367 = vcmp.ge.f32.partialorder %v1365, 0.0
    %v1368 = vstv %s941
    %v1369 = vmul.f32 %v1368, %v1364
    %v1370 = vmul.f32 %v1368, %v1365
    %v1371 = vsel %vm1366, %v1364, %v1369
    %v1372 = vsel %vm1367, %v1365, %v1370
    %s1373 = scalar_lea.vmem %s11, 16
    %v1374 = vld [vmem:[%s1373] sm:$0xff]
    %v1375 = vld [vmem:[%s1373 + $0x8] sm:$0xff]
    %s1376 = scalar_lea.vmem %s12, 16
    %v1377 = vld [vmem:[%s1376] sm:$0xff]
    %v1378 = vld [vmem:[%s1376 + $0x8] sm:$0xff]
    %v1379 = vmul.f32 %v1371, %v1371
    %v1380 = vmul.f32 %v1372, %v1372
    %1381 = vmatpush.msra.mxu0 %v156
    %1382 = vmatpush.msra.mxu0 %v155
    %1383 = vmatpush.msra.mxu0 %v154
    %1384 = vmatpush.msra.mxu0 %v153
    %1385 = vmatpush.msra.mxu0 %v152
    %1386 = vmatpush.msra.mxu0 %v151
    %1387 = vmatpush.msra.mxu0 %v150
    %1388 = vmatpush.msra.mxu0 %v149
    %1389 = vmatpush.msra.mxu0 %v148
    %1390 = vmatpush.msra.mxu0 %v147
    %1391 = vmatpush.msra.mxu0 %v146
    %1392 = vmatpush.msra.mxu0 %v145
    %1393 = vmatpush.msra.mxu0 %v144
    %1394 = vmatpush.msra.mxu0 %v143
    %1395 = vmatpush.msra.mxu0 %v142
    %1396 = vmatpush.msra.mxu0 %v141
    %1397 = vmatmul.f32.gmra.mxu0 %v1371
    %v1398 = vpop.f32.mrf.mxu0
    %v1399 = vadd.f32 0.0, %v1398
    %1400 = vmatmul.f32.gmra.mxu0 %v1372
    %v1401 = vpop.f32.mrf.mxu0
    %v1402 = vadd.f32 0.0, %v1401
    %1403 = vmatmul.f32.gmra.mxu0 %v1379
    %v1404 = vpop.f32.mrf.mxu0
    %v1405 = vadd.f32 0.0, %v1404
    %1406 = vmatmul.f32.gmra.mxu0 %v1380
    %v1407 = vpop.f32.mrf.mxu0
    %v1408 = vadd.f32 0.0, %v1407
    %1409 = vdwg.mxu0
    %v1410 = vadd.f32 %v1399, %v1402
    %v1411 = vrot.slane %v1410, 4
    %v1412 = vadd.f32 %v1410, %v1411
    %v1413 = vrot.slane %v1412, 2
    %v1414 = vadd.f32 %v1412, %v1413
    %v1415 = vrot.slane %v1414, 1
    %v1416 = vadd.f32 %v1414, %v1415
    %v1417 = vadd.f32 %v1405, %v1408
    %v1418 = vrot.slane %v1417, 4
    %v1419 = vadd.f32 %v1417, %v1418
    %v1420 = vrot.slane %v1419, 2
    %v1421 = vadd.f32 %v1419, %v1420
    %v1422 = vrot.slane %v1421, 1
    %v1423 = vadd.f32 %v1421, %v1422
    %v1424 = vmul.f32 %v1416, 0.001953125
    %v1425 = vmul.f32 %v1423, 0.001953125
    %v1426 = vmul.f32 %v1424, %v1424
    %v1427 = vsub.f32 %v1425, %v1426
    %v1428 = vmax.f32 %v1427, 0.0
    %v1429 = vsub.f32 %v1371, %v1424
    %v1430 = vsub.f32 %v1372, %v1424
    %v1431 = vadd.f32 %v1428, 1e-08
    %v1432 = vrsqrt.pop %v1431
    %v1433 = vmul.f32 %v1432, %v1431
    %v1434 = vmul.f32 %v1433, %v1432
    %v1435 = vmul.f32 0.5, %v1434
    %v1436 = vsub.f32 1.5, %v1435
    %v1437 = vmul.f32 %v1432, %v1436
    %vm1438 = vweird.f32 %v1431
    %vm1439 = vweird.f32 %v1432
    %vm1440 = vmor %vm1438, %vm1439
    %v1441 = vsel %vm1440, %v1432, %v1437
    %v1442 = vmul.f32 %v1429, %v1441
    %v1443 = vmul.f32 %v1430, %v1441
    %1445 = vset.pattern.permute.xlu0 0
    %1446 = vperm.xlu0 %1445, %v1374
    %v1447 = vpop.permute.xlu0 %1446
    %1450 = vset.pattern.permute.xlu0 0
    %1451 = vperm.xlu0 %1450, %v1375
    %v1452 = vpop.permute.xlu0 %1451
    %v1454 = vmul.f32 %v1442, %v1447
    %v1455 = vmul.f32 %v1443, %v1452
    %1457 = vset.pattern.permute.xlu0 0
    %1458 = vperm.xlu0 %1457, %v1377
    %v1459 = vpop.permute.xlu0 %1458
    %1462 = vset.pattern.permute.xlu0 0
    %1463 = vperm.xlu0 %1462, %v1378
    %v1464 = vpop.permute.xlu0 %1463
    %v1466 = vadd.f32 %v1454, %v1459
    %v1467 = vadd.f32 %v1455, %v1464
    %s1468 = scalar_lea.vmem %s18, 1
    %v1469 = vld [vmem:[%s1468] sm:$0x1]
    %v1471 = vperm.slane %v1469, 0
    %v1473 = vmul.f32 %v1471, %v1466
    %v1474 = vmul.f32 %v1471, %v1467
    %s1475 = scalar_lea.vmem %s19, 1
    %v1476 = vld [vmem:[%s1475] sm:$0x1]
    %v1478 = vperm.slane %v1476, 0
    %v1480 = vadd.f32 %v1473, %v1478
    %v1481 = vadd.f32 %v1474, %v1478
    %vm1482 = vcmp.ge.f32.partialorder %v1480, 0.0
    %vm1483 = vcmp.ge.f32.partialorder %v1481, 0.0
    %v1484 = vmul.f32 %v990, %v1480
    %v1485 = vmul.f32 %v990, %v1481
    %v1486 = vsel %vm1482, %v1480, %v1484
    %v1487 = vsel %vm1483, %v1481, %v1485
    %v1488 = vmul.f32 %v1486, %v1486
    %v1489 = vmul.f32 %v1487, %v1487
    %1490 = vmatpush.msra.mxu0 %v156
    %1491 = vmatpush.msra.mxu0 %v155
    %1492 = vmatpush.msra.mxu0 %v154
    %1493 = vmatpush.msra.mxu0 %v153
    %1494 = vmatpush.msra.mxu0 %v152
    %1495 = vmatpush.msra.mxu0 %v151
    %1496 = vmatpush.msra.mxu0 %v150
    %1497 = vmatpush.msra.mxu0 %v149
    %1498 = vmatpush.msra.mxu0 %v148
    %1499 = vmatpush.msra.mxu0 %v147
    %1500 = vmatpush.msra.mxu0 %v146
    %1501 = vmatpush.msra.mxu0 %v145
    %1502 = vmatpush.msra.mxu0 %v144
    %1503 = vmatpush.msra.mxu0 %v143
    %1504 = vmatpush.msra.mxu0 %v142
    %1505 = vmatpush.msra.mxu0 %v141
    %1506 = vmatmul.f32.gmra.mxu0 %v1486
    %v1507 = vpop.f32.mrf.mxu0
    %v1508 = vadd.f32 0.0, %v1507
    %1509 = vmatmul.f32.gmra.mxu0 %v1487
    %v1510 = vpop.f32.mrf.mxu0
    %v1511 = vadd.f32 0.0, %v1510
    %1512 = vmatmul.f32.gmra.mxu0 %v1488
    %v1513 = vpop.f32.mrf.mxu0
    %v1514 = vadd.f32 0.0, %v1513
    %1515 = vmatmul.f32.gmra.mxu0 %v1489
    %v1516 = vpop.f32.mrf.mxu0
    %v1517 = vadd.f32 0.0, %v1516
    %1518 = vdwg.mxu0
    %v1519 = vadd.f32 %v1508, %v1511
    %v1520 = vrot.slane %v1519, 4
    %v1521 = vadd.f32 %v1519, %v1520
    %v1522 = vrot.slane %v1521, 2
    %v1523 = vadd.f32 %v1521, %v1522
    %v1524 = vrot.slane %v1523, 1
    %v1525 = vadd.f32 %v1523, %v1524
    %v1526 = vadd.f32 %v1514, %v1517
    %v1527 = vrot.slane %v1526, 4
    %v1528 = vadd.f32 %v1526, %v1527
    %v1529 = vrot.slane %v1528, 2
    %v1530 = vadd.f32 %v1528, %v1529
    %v1531 = vrot.slane %v1530, 1
    %v1532 = vadd.f32 %v1530, %v1531
    %v1533 = vmul.f32 %v1525, 0.001953125
    %v1534 = vmul.f32 %v1532, 0.001953125
    %v1535 = vmul.f32 %v1533, %v1533
    %v1536 = vsub.f32 %v1534, %v1535
    %v1537 = vmax.f32 %v1536, 0.0
    %v1538 = vsub.f32 %v1486, %v1533
    %v1539 = vsub.f32 %v1487, %v1533
    %v1540 = vadd.f32 %v1537, 1e-08
    %v1541 = vrsqrt.pop %v1540
    %v1542 = vmul.f32 %v1541, %v1540
    %v1543 = vmul.f32 %v1542, %v1541
    %v1544 = vmul.f32 0.5, %v1543
    %v1545 = vsub.f32 1.5, %v1544
    %v1546 = vmul.f32 %v1541, %v1545
    %vm1547 = vweird.f32 %v1540
    %vm1548 = vweird.f32 %v1541
    %vm1549 = vmor %vm1547, %vm1548
    %v1550 = vsel %vm1549, %v1541, %v1546
    %v1551 = vmul.f32 %v1538, %v1550
    %v1552 = vmul.f32 %v1539, %v1550
    %v1553 = vmul.f32 %v1551, %v1069
    %v1554 = vmul.f32 %v1552, %v1074
    %v1555 = vadd.f32 %v1553, %v1081
    %v1556 = vadd.f32 %v1554, %v1086
    %s1557 = scalar_lea.vmem %s13, 16
    %v1558 = vld [vmem:[%s1557] sm:$0xff]
    %v1559 = vld [vmem:[%s1557 + $0x8] sm:$0xff]
    %s1560 = scalar_lea.vmem %s14, 16
    %v1561 = vld [vmem:[%s1560] sm:$0xff]
    %v1562 = vld [vmem:[%s1560 + $0x8] sm:$0xff]
    %1564 = vset.pattern.permute.xlu0 0
    %1565 = vperm.xlu0 %1564, %v1561
    %v1566 = vpop.permute.xlu0 %1565
    %1568 = vset.pattern.permute.xlu0 0
    %1569 = vperm.xlu0 %1568, %v1562
    %v1570 = vpop.permute.xlu0 %1569
    %v1573 = vsel %vm423, %v1558, 0
    %v1576 = vsel %vm423, %v1559, 0
    %1578 = vmatpush.msra.mxu0 0.0
    %1579 = vmatpush.msra.mxu0 0.0
    %1580 = vmatpush.msra.mxu0 0.0
    %1581 = vmatpush.msra.mxu0 0.0
    %1582 = vmatpush.msra.mxu0 0.0
    %1583 = vmatpush.msra.mxu0 0.0
    %1584 = vmatpush.msra.mxu0 0.0
    %1585 = vmatpush.msra.mxu0 0.0
    %1586 = vmatpush.msra.mxu0 0.0
    %1587 = vmatpush.msra.mxu0 0.0
    %1588 = vmatpush.msra.mxu0 0.0
    %1589 = vmatpush.msra.mxu0 0.0
    %1590 = vmatpush.msra.mxu0 0.0
    %1591 = vmatpush.msra.mxu0 0.0
    %1592 = vmatpush.msra.mxu0 %v1556
    %1593 = vmatpush.msra.mxu0 %v1555
    %1594 = vmatmul.f32.gmra.mxu0 %v1573
    %v1595 = vpop.f32.mrf.mxu0
    %1596 = vmatmul.f32.gmra.mxu0 %v1576
    %v1597 = vpop.f32.mrf.mxu0
    %v1598 = vadd.f32 %v1570, %v1597
    %1599 = vdwg.mxu0
    %v1600 = vadd.f32 %v939, %v1598
    %s1601 = sld [smem:[#allocation9 + $0x6]]
    %v1602 = vld [vmem:[%s15] sm:$0xff]
    %vm1603 = vcmp.ge.f32.partialorder %v1600, 0.0
    %v1604 = vstv %s1601
    %v1605 = vmul.f32 %v1604, %v1600
    %v1606 = vsel %vm1603, %v1600, %v1605
    %v1607 = vld [vmem:[%s16] sm:$0xff]
    %1609 = vset.pattern.permute.xlu0 0
    %1610 = vperm.xlu0 %1609, %v1607
    %v1611 = vpop.permute.xlu0 %1610
    %v1614 = vsel %vm253, %v1602, 0
    %1616 = vmatpush.msra.mxu0 0.0
    %1617 = vmatpush.msra.mxu0 0.0
    %1618 = vmatpush.msra.mxu0 0.0
    %1619 = vmatpush.msra.mxu0 0.0
    %1620 = vmatpush.msra.mxu0 0.0
    %1621 = vmatpush.msra.mxu0 0.0
    %1622 = vmatpush.msra.mxu0 0.0
    %1623 = vmatpush.msra.mxu0 0.0
    %1624 = vmatpush.msra.mxu0 0.0
    %1625 = vmatpush.msra.mxu0 0.0
    %1626 = vmatpush.msra.mxu0 0.0
    %1627 = vmatpush.msra.mxu0 0.0
    %1628 = vmatpush.msra.mxu0 0.0
    %1629 = vmatpush.msra.mxu0 0.0
    %1630 = vmatpush.msra.mxu0 0.0
    %1631 = vmatpush.msra.mxu0 %v1606
    %1632 = vmatmul.f32.gmra.mxu0 %v1614
    %v1633 = vpop.f32.mrf.mxu0
    %v1634 = vadd.f32 %v1611, %v1633
    %1635 = vdwg.mxu0
    %1636 = vst [vmem:[#allocation10] sm:$0xff] %v1634
    // Predicated region
    $region118: #{tpu_custom_call.1} parent=1 // pred_check
      _
    $region119: #{tpu_custom_call.1} parent=1 // pred_check_branch
      %1638 = sbr.rel (0) target = $region121
    $region120: #{tpu_custom_call.1} parent=1 // pred_region
      %1640 = vsyncadd [#allocation4], 0
      %s1642 = sshll.u32 [#allocation10], 4
      %s1643 = int_to_ptr.vmem [resolvable:$true] %s1642
      %s1644 = sshll.u32 %s25, 4
      %s1645 = int_to_ptr.hbm [resolvable:$true] %s1644
      %1647 = dma.vmem_to_hbm [thread:$0]  %s1643, 128, %s1645, [#allocation4]
    $region121: #{tpu_custom_call.1} parent=1 // pred_fallthru
      _
    // Predicated region
    $region122: #{tpu_custom_call.1} parent=1 // pred_check
      _
    $region123: #{tpu_custom_call.1} parent=1 // pred_check_branch
      %1649 = sbr.rel (0) target = $region125
    $region124: #{tpu_custom_call.1} parent=1 // pred_region
      %1651 = dma.done [#allocation4], 128
    $region125: #{tpu_custom_call.1} parent=1 // pred_fallthru
      _
    %1652 = vsyncpa [#allocation3], 1
    %1653 = vsyncpa [#allocation7], 1
    %1654 = vsyncpa [#allocation4], 1
    %1655 = vsyncpa [#allocation5], 1

</llo_original>
